<compile_context>
chip_gen: v5e
topology: v5e:2x2
jax: 0.10.0
libtpu: 0.0.40
codegen_flags: <defaults>
</compile_context>

<pallas_src>
import functools
import numpy as np

import jax
import jax.numpy as jnp
from jax.experimental import pallas as pl
from jax.experimental.pallas import tpu as pltpu


def _round_up(a, b):
    return -(-a // b) * b


def _cdiv(a, b):
    return -(-a // b)


# ----------------------------------------------------------------------------
# Glue: sinc band-pass taps and the dense Hilbert-transform operator.
# ----------------------------------------------------------------------------
def _make_filters(coef_freq, coef_bandwidth, *, kernel_size, srate,
                  margin_frequency, margin_bandwidth):
    """(C_out, K) sinc band-pass taps (matches the PyTorch module)."""
    K = kernel_size
    freq = margin_frequency + jax.nn.softplus(coef_freq)
    bw = jax.nn.sigmoid(coef_bandwidth) * (1.0 - 2.0 * margin_bandwidth) + margin_bandwidth
    bw = bw * freq
    f_lo = freq - bw / 2.0
    f_hi = freq + bw / 2.0
    # torch.arange(-K//2 + 1, K//2 + 1) / srate
    scale = jnp.arange((-K) // 2 + 1, K // 2 + 1, dtype=jnp.float32) / srate
    # torch.hamming_window default (periodic=True): 0.54 - 0.46*cos(2*pi*n/K)
    hamming = 0.54 - 0.46 * jnp.cos(2.0 * jnp.pi * jnp.arange(K, dtype=jnp.float32) / K)
    filt_lo = f_lo[:, None] * jnp.sinc(2.0 * f_lo[:, None] * scale[None, :])
    filt_hi = f_hi[:, None] * jnp.sinc(2.0 * f_hi[:, None] * scale[None, :])
    return hamming[None, :] * 2.0 * (filt_hi - filt_lo) / srate          # (C_out, K)


def _hilbert_matrix(n):
    """Dense Hilbert operator HT (n, n) with hilbert(y) = y @ HT (time = last axis)."""
    h = np.zeros((n,), dtype=np.float64)
    h[0] = 1.0
    if n % 2 == 0:
        h[n // 2] = 1.0
        h[1:n // 2] = 2.0
    else:
        h[1:(n + 1) // 2] = 2.0
    dft = np.fft.fft(np.eye(n), axis=0)                  # DFT matrix
    m = np.fft.ifft(h[:, None] * dft, axis=0)            # IDFT diag(h) DFT
    return np.imag(m).T                                  # hilbert(y) = y @ HT


# ----------------------------------------------------------------------------
# Per-generation tiling defaults.
# ----------------------------------------------------------------------------
def _device_defaults():
    """Returns (row_tile, lane_align, vmem_budget, vmem_limit_cap)."""
    kind = ""
    try:
        kind = jax.devices()[0].device_kind.lower()
    except Exception:
        pass
    vmem_cap = None
    try:
        vmem_cap = int(pltpu.get_tpu_info().vmem_capacity_bytes)
    except Exception:
        vmem_cap = None
    is_v5e = ("v5 lite" in kind) or ("v5e" in kind) or ("v5lite" in kind)
    is_v6 = "v6" in kind
    is_v7 = ("v7" in kind) or ("tpu7" in kind)
    if vmem_cap is None:
        # v5e/v6e have 128 MiB of VMEM per core, v7x has 64 MiB; be conservative
        # for unknown generations.
        vmem_cap = (128 * 2**20) if (is_v5e or is_v6) else (64 * 2**20)
    row_tile = 256 if (is_v6 or is_v7) else 128
    lane = 256 if (is_v6 or is_v7) else 128                 # 256x256 MXU on v6e/v7x
    vmem_budget = min(int(0.65 * vmem_cap), 96 * 2**20)     # used for HT column tiling
    vmem_limit_cap = min(int(0.85 * vmem_cap), 108 * 2**20)  # scoped-VMEM limit ceiling
    return row_tile, lane, vmem_budget, vmem_limit_cap


# ----------------------------------------------------------------------------
# Pallas kernel.
# ----------------------------------------------------------------------------
def _sinc_hilbert_kernel(x_ref, filt_ref, ht_ref, o_ref, y32_ref, ybf_ref, *,
                         K, m, bri, pad_h, Lp, CT):
    # x_ref:    (bri, Lp)   f32 padded input rows of this row tile (un-expanded)
    # filt_ref: (RT, K)     f32 per-output-row sinc taps (sub-block permuted)
    # ht_ref:   (Lp, CT)    bf16 pre-cropped, pre-rolled Hilbert operator columns
    # o_ref:    (RT, CT)    f32 envelope output (lane-dense; cropped in glue)
    # y32_ref:  (RT, Lp)    f32 FIR result scratch (cached across column tiles)
    # ybf_ref:  (RT, Lp)    bf16 FIR result scratch (matmul LHS)
    j = pl.program_id(1)

    @pl.when(j == 0)
    def _fir():
        xin = x_ref[...]                               # (bri, Lp) f32
        filt = filt_ref[...]                           # (m*bri, K) f32
        # Depthwise FIR with the Hilbert-guard offset folded into the tap shift:
        #   y[:, t] = sum_k filt[:, k] * xpad[:, t + pad_h + k]
        # One XLU roll per tap on the un-expanded block; m VPU MACs per tap.
        for k in range(K):
            s = (pad_h + k) % Lp
            shifted = xin if s == 0 else pltpu.roll(xin, shift=Lp - s, axis=1)
            for e in range(m):
                rows = slice(e * bri, (e + 1) * bri)
                # TODO(synk): per review, verify in the bundle dump that the
                # (bri, 1) tap-column broadcast is hoisted across lane tiles.
                contrib = filt[e * bri:(e + 1) * bri, k:k + 1] * shifted
                if k == 0:
                    y32_ref[rows, :] = contrib
                else:
                    y32_ref[rows, :] = y32_ref[rows, :] + contrib
        ybf_ref[...] = y32_ref[...].astype(jnp.bfloat16)

    # Hilbert transform on the MXU for this output column tile (bf16 x bf16,
    # f32 accumulation).  HT rows were pre-rolled so the result is already the
    # output-window columns [j*CT, (j+1)*CT).
    hil = jnp.dot(ybf_ref[...], ht_ref[...],
                  preferred_element_type=jnp.float32)      # (RT, CT) f32

    col0 = pl.multiple_of(j * CT, CT)
    y_out = y32_ref[:, pl.ds(col0, CT)]                    # (RT, CT) f32, lane aligned
    o_ref[...] = jnp.sqrt(y_out * y_out + hil * hil)       # |analytic signal|


# ----------------------------------------------------------------------------
# Wrapper.
# ----------------------------------------------------------------------------
def sinc_hilbert_forward(x, coef_freq, coef_bandwidth, *, kernel_size, srate,
                         in_channels, out_channels,
                         margin_frequency=0.3, margin_bandwidth=0.05,
                         row_tile=None, col_tile=None, lane_align=None):
    """SincHilbertLayer1d.forward(x) with x of shape (B, C_in, T) -> (B, C_out, T)."""
    B, C_in, T = x.shape
    assert C_in == in_channels
    assert out_channels % in_channels == 0
    C_out = out_channels
    m = C_out // C_in
    K = int(kernel_size)
    assert K % 2 == 1, "odd kernel_size assumed for symmetric 'same' padding"
    pad_conv = (K - 1) // 2
    # TODO(synk): TemporalPad source not provided; assuming padding_hilbert ==
    # kernel_size for the Hilbert guard (cropped after the envelope).
    pad_h = K
    N = T + 2 * pad_h                       # conv output length before the final crop
    L = N + 2 * pad_conv                    # padded input length ('valid' conv -> N)
    lpad = pad_conv + pad_h

    dflt_rt, dflt_lane, vmem_budget, vmem_limit_cap = _device_defaults()
    row_tile = dflt_rt if row_tile is None else int(row_tile)
    lane = dflt_lane if lane_align is None else int(lane_align)

    # ----- row (M) tiling over the flattened (B, C_out) axis -----
    # RT must be a multiple of 8*m (sub-block sublane alignment) and of 16
    # (bf16 scratch sublane tiling).
    rt_unit = 8 * m
    if rt_unit % 16:
        rt_unit *= 2
    M_total = B * C_out
    RT = min(_round_up(row_tile, rt_unit), _round_up(M_total, rt_unit))
    M_pad = _round_up(M_total, RT)
    num_row_tiles = M_pad // RT
    bri = RT // m                           # input rows per tile (un-expanded)
    rows_in = M_pad // m

    Lp = _round_up(L, lane)                 # lane-aligned padded input length
    Tp = _round_up(T, lane)                 # lane-aligned output length

    # ----- Hilbert-operator column tiling so the working set fits VMEM -----
    def vmem_est(lp, ct, nbuf_ht):
        return (2 * bri * lp * 4            # x blocks (double buffered)
                + 2 * RT * K * 4            # taps blocks
                + nbuf_ht * lp * ct * 2     # Hilbert operator blocks (bf16)
                + 2 * RT * ct * 4           # output blocks
                + RT * lp * 4               # y scratch (f32)
                + RT * lp * 2               # y scratch (bf16 matmul LHS)
                + 2 * RT * ct * 4)          # in-kernel temporaries (hil, y_out)

    max_ct = Tp if col_tile is None else max(128, min(_round_up(int(col_tile), 128), Tp))
    CT = max_ct
    while CT > 128 and vmem_est(Lp, CT, 1 if CT >= Tp else 2) > vmem_budget:
        CT -= 128
    num_cols = _cdiv(Tp, CT)
    CT = _round_up(_cdiv(Tp, num_cols), 128)          # balance column tiles
    num_cols = _cdiv(Tp, CT)
    Tp_pad = num_cols * CT
    Lp = max(Lp, _round_up(Tp_pad, lane))             # y scratch must cover Tp_pad cols
    nbuf_ht = 1 if num_cols == 1 else 2
    est = vmem_est(Lp, CT, nbuf_ht)
    if est > vmem_limit_cap:
        raise ValueError(
            f"estimated VMEM working set {est / 2**20:.1f} MiB exceeds the per-core "
            f"budget ({vmem_limit_cap / 2**20:.0f} MiB); reduce row_tile (currently {RT})")
    vmem_limit = int(min(max(est * 1.4, 32 * 2**20), vmem_limit_cap))

    # ----- filters + row permutation (group sub-block layout inside each tile) -----
    filt = _make_filters(coef_freq, coef_bandwidth, kernel_size=K, srate=srate,
                         margin_frequency=margin_frequency,
                         margin_bandwidth=margin_bandwidth)               # (C_out, K)
    filt_nat = jnp.tile(filt, (B, 1))                                     # (B*C_out, K)
    filt_nat = jnp.pad(filt_nat, ((0, M_pad - M_total), (0, 0))).astype(jnp.float32)
    # Permuted row P = i*RT + e*bri + q  <->  natural row R = (i*bri + q)*m + e.
    P = np.arange(M_pad)
    i_idx, rem = P // RT, P % RT
    e_idx, q_idx = rem // bri, rem % bri
    nat = (i_idx * bri + q_idx) * m + e_idx
    inv = np.empty_like(nat)
    inv[nat] = P
    filt_perm = filt_nat[nat]                                             # (M_pad, K)

    # ----- input rows (un-expanded; expansion happens in-kernel) -----
    x_rows = x.reshape(B * C_in, T).astype(jnp.float32)
    x_rows = jnp.pad(x_rows, ((0, rows_in - B * C_in), (lpad, Lp - T - lpad)))

    # ----- pre-cropped, pre-rolled, zero-padded Hilbert operator (bf16) -----
    # Columns are cropped to the output window, rows [N, Lp) are zero so circular
    # wrap contamination in y never reaches the output, and rows are pre-rolled
    # by pad_h to match the pad_h-folded FIR.
    ht_full = np.zeros((Lp, Tp_pad), dtype=np.float32)
    ht_full[:N, :T] = _hilbert_matrix(N)[:, pad_h:pad_h + T]
    assert not np.any(ht_full[N:, :]), "Hilbert-operator padding rows must stay zero"
    ht_rolled = np.roll(ht_full, -pad_h, axis=0)
    ht_dev = jnp.asarray(ht_rolled, dtype=jnp.bfloat16)                   # (Lp, Tp_pad)

    kernel = functools.partial(_sinc_hilbert_kernel, K=K, m=m, bri=bri,
                               pad_h=pad_h, Lp=Lp, CT=CT)

    def build(ht_single_buffer):
        ht_kwargs = {"pipeline_mode": pl.Buffered(1)} if ht_single_buffer else {}
        grid_spec = pltpu.PrefetchScalarGridSpec(
            num_scalar_prefetch=0,
            grid=(num_row_tiles, num_cols),
            in_specs=[
                pl.BlockSpec((bri, Lp), lambda i, j: (i, 0)),             # input rows
                pl.BlockSpec((RT, K), lambda i, j: (i, 0)),               # per-row taps
                pl.BlockSpec((Lp, CT), lambda i, j: (0, j), **ht_kwargs),  # Hilbert op
            ],
            out_specs=pl.BlockSpec((RT, CT), lambda i, j: (i, j)),
            scratch_shapes=[pltpu.VMEM((RT, Lp), jnp.float32),
                            pltpu.VMEM((RT, Lp), jnp.bfloat16)],
        )
        return pl.pallas_call(
            kernel,
            out_shape=jax.ShapeDtypeStruct((M_pad, Tp_pad), jnp.float32),
            grid_spec=grid_spec,
            compiler_params=pltpu.CompilerParams(
                # TODO(synk): on v7x with a single row tile the second TensorCore
                # idles; a parallel column split (recomputing the cheap FIR per
                # column) would recover it.
                dimension_semantics=("parallel", "arbitrary"),
                vmem_limit_bytes=vmem_limit),
        )

    use_single = (num_cols == 1) and hasattr(pl, "Buffered")
    if use_single:
        try:
            out = build(True)(x_rows, filt_perm, ht_dev)
        except Exception:
            # Fallback if single-buffering of the constant HT block is rejected.
            out = build(False)(x_rows, filt_perm, ht_dev)
    else:
        out = build(False)(x_rows, filt_perm, ht_dev)

    # Inverse row permutation + crop back to (B, C_out, T).
    out = jnp.take(out, jnp.asarray(inv[:M_total], dtype=jnp.int32), axis=0)[:, :T]
    return out.reshape(B, C_out, T)


# ----------------------------------------------------------------------------
# Pure-JAX (XLA) reference of the same forward pass, for validation.
# ----------------------------------------------------------------------------
def sinc_hilbert_reference(x, coef_freq, coef_bandwidth, *, kernel_size, srate,
                           in_channels, out_channels,
                           margin_frequency=0.3, margin_bandwidth=0.05):
    B, C_in, T = x.shape
    C_out = out_channels
    m = C_out // C_in
    K = int(kernel_size)
    pad_conv = (K - 1) // 2
    pad_h = K
    N = T + 2 * pad_h
    filt = _make_filters(coef_freq, coef_bandwidth, kernel_size=K, srate=srate,
                         margin_frequency=margin_frequency,
                         margin_bandwidth=margin_bandwidth)                # (C_out, K)
    xp = jnp.pad(x.astype(jnp.float32),
                 ((0, 0), (0, 0), (pad_conv + pad_h, pad_conv + pad_h)))
    xe = jnp.repeat(xp, m, axis=1)                                         # (B, C_out, L)
    y = jnp.zeros((B, C_out, N), dtype=jnp.float32)
    for k in range(K):
        y = y + filt[:, k][None, :, None] * xe[:, :, k:k + N]
    ht = jnp.asarray(_hilbert_matrix(N), dtype=jnp.float32)                # (N, N)
    hil = jnp.einsum('bcn,nt->bct', y, ht)
    env = jnp.sqrt(y * y + hil * hil)
    return env[:, :, pad_h:pad_h + T]


if __name__ == "__main__":
    key = jax.random.PRNGKey(0)

    def run_case(case_id, *, B, C_in, C_out, T, K, srate, fmin, fmax, **tile_kwargs):
        kx, kf, kb = jax.random.split(jax.random.fold_in(key, case_id), 3)
        x = jax.random.normal(kx, (B, C_in, T), dtype=jnp.float32)
        # Same parameter distributions as the PyTorch module's __init__.
        coef_freq = fmin + jax.random.uniform(kf, (C_out,), dtype=jnp.float32) * (fmax - fmin)
        p = jax.random.uniform(kb, (C_out,), dtype=jnp.float32) * 0.95 + 0.025
        coef_bandwidth = jnp.log(p / (1.0 - p))

        out = sinc_hilbert_forward(
            x, coef_freq, coef_bandwidth, kernel_size=K, srate=srate,
            in_channels=C_in, out_channels=C_out, **tile_kwargs)
        out = jax.block_until_ready(out)
        assert out.shape == (B, C_out, T)
        assert bool(jnp.all(jnp.isfinite(out)))

        ref = jax.block_until_ready(sinc_hilbert_reference(
            x, coef_freq, coef_bandwidth, kernel_size=K, srate=srate,
            in_channels=C_in, out_channels=C_out))
        max_err = float(jnp.max(jnp.abs(out - ref)))
        scale = float(jnp.max(jnp.abs(ref)))
        # Loose tolerance covers the bf16 Hilbert matmul on the MXU; structural
        # errors would be O(1) relative.
        assert max_err <= 5e-2 * scale + 1e-4, (case_id, max_err, scale)

    # Case 0: module-sized example (single row tile, single column tile).
    run_case(0, B=2, C_in=4, C_out=8, T=16, K=9, srate=64.0, fmin=1.0, fmax=15.0)
    # Case 1: exercises the group sub-block layout (m=4), multiple row tiles with
    # padded rows, and the Hilbert-operator column-tiling path.
    run_case(1, B=5, C_in=2, C_out=8, T=300, K=7, srate=128.0, fmin=1.0, fmax=30.0,
             row_tile=32, col_tile=128, lane_align=128)

    print("KERNEL_OK")
</pallas_src>

<mosaic_0001>
module attributes {stable_mosaic.version = 11 : i64} {
  func.func @_sinc_hilbert_kernel(%arg0: i32, %arg1: i32, %arg2: memref<8x128xf32, #tpu.memory_space<vmem>>, %arg3: memref<16x9xf32, #tpu.memory_space<vmem>>, %arg4: memref<128x128xbf16, #tpu.memory_space<vmem>>, %arg5: memref<16x128xf32, #tpu.memory_space<vmem>>, %arg6: memref<16x128xf32, #tpu.memory_space<vmem>>, %arg7: memref<16x128xbf16, #tpu.memory_space<vmem>>) attributes {dimension_semantics = [#tpu.dimension_semantics<parallel>, #tpu.dimension_semantics<arbitrary>], iteration_bounds = array<i64: 1, 1>, scalar_prefetch = 0 : i64, scratch_operands = 2 : i64, tpu.core_type = #tpu.core_type<tc>, window_params = [{transform_indices = @transform_0, window_bounds = array<i64: 8, 128>}, {transform_indices = @transform_1, window_bounds = array<i64: 16, 9>}, {pipeline_mode = #tpu.pipeline_mode<synchronous>, transform_indices = @transform_2, window_bounds = array<i64: 128, 128>}, {transform_indices = @transform_3, window_bounds = array<i64: 16, 128>}]} {
    %c0_i32 = arith.constant 0 : i32
    %0 = arith.cmpi eq, %arg1, %c0_i32 : i32
    %1 = arith.extui %0 : i1 to i32
    %c0_i32_0 = arith.constant 0 : i32
    %2 = arith.cmpi ne, %1, %c0_i32_0 : i32
    scf.if %2 {
      %c0_7 = arith.constant 0 : index
      %c0_8 = arith.constant 0 : index
      %15 = vector.load %arg2[%c0_7, %c0_8] : memref<8x128xf32, #tpu.memory_space<vmem>>, vector<8x128xf32>
      %c0_9 = arith.constant 0 : index
      %c0_10 = arith.constant 0 : index
      %16 = vector.load %arg3[%c0_9, %c0_10] : memref<16x9xf32, #tpu.memory_space<vmem>>, vector<16x9xf32>
      %c119_i32 = arith.constant 119 : i32
      %17 = tpu.dynamic_rotate %15 by %c119_i32 dim 1 : vector<8x128xf32>, i32 -> vector<8x128xf32>
      %18 = vector.extract_strided_slice %16 {offsets = [0, 0], sizes = [8, 1], strides = [1, 1]} : vector<16x9xf32> to vector<8x1xf32>
      %19 = vector.broadcast %18 : vector<8x1xf32> to vector<8x128xf32>
      %20 = arith.mulf %19, %17 : vector<8x128xf32>
      %c0_11 = arith.constant 0 : index
      %c0_12 = arith.constant 0 : index
      %21 = vector.load %arg6[%c0_11, %c0_12] : memref<16x128xf32, #tpu.memory_space<vmem>>, vector<8x128xf32>
      tpu.vector_store %arg6[%c0_11, %c0_12], %20 {strides = array<i32>} : memref<16x128xf32, #tpu.memory_space<vmem>>, vector<8x128xf32>,
      %22 = vector.extract_strided_slice %16 {offsets = [8, 0], sizes = [8, 1], strides = [1, 1]} : vector<16x9xf32> to vector<8x1xf32>
      %23 = vector.broadcast %22 : vector<8x1xf32> to vector<8x128xf32>
      %24 = arith.mulf %23, %17 : vector<8x128xf32>
      %c8 = arith.constant 8 : index
      %c0_13 = arith.constant 0 : index
      %25 = vector.load %arg6[%c8, %c0_13] : memref<16x128xf32, #tpu.memory_space<vmem>>, vector<8x128xf32>
      tpu.vector_store %arg6[%c8, %c0_13], %24 {strides = array<i32>} : memref<16x128xf32, #tpu.memory_space<vmem>>, vector<8x128xf32>,
      %c118_i32 = arith.constant 118 : i32
      %26 = tpu.dynamic_rotate %15 by %c118_i32 dim 1 : vector<8x128xf32>, i32 -> vector<8x128xf32>
      %27 = vector.extract_strided_slice %16 {offsets = [0, 1], sizes = [8, 1], strides = [1, 1]} : vector<16x9xf32> to vector<8x1xf32>
      %28 = vector.broadcast %27 : vector<8x1xf32> to vector<8x128xf32>
      %29 = arith.mulf %28, %26 : vector<8x128xf32>
      %c0_14 = arith.constant 0 : index
      %c0_15 = arith.constant 0 : index
      %30 = vector.load %arg6[%c0_14, %c0_15] : memref<16x128xf32, #tpu.memory_space<vmem>>, vector<8x128xf32>
      %31 = arith.addf %30, %29 : vector<8x128xf32>
      %c0_16 = arith.constant 0 : index
      %c0_17 = arith.constant 0 : index
      %32 = vector.load %arg6[%c0_16, %c0_17] : memref<16x128xf32, #tpu.memory_space<vmem>>, vector<8x128xf32>
      tpu.vector_store %arg6[%c0_16, %c0_17], %31 {strides = array<i32>} : memref<16x128xf32, #tpu.memory_space<vmem>>, vector<8x128xf32>,
      %33 = vector.extract_strided_slice %16 {offsets = [8, 1], sizes = [8, 1], strides = [1, 1]} : vector<16x9xf32> to vector<8x1xf32>
      %34 = vector.broadcast %33 : vector<8x1xf32> to vector<8x128xf32>
      %35 = arith.mulf %34, %26 : vector<8x128xf32>
      %c8_18 = arith.constant 8 : index
      %c0_19 = arith.constant 0 : index
      %36 = vector.load %arg6[%c8_18, %c0_19] : memref<16x128xf32, #tpu.memory_space<vmem>>, vector<8x128xf32>
      %37 = arith.addf %36, %35 : vector<8x128xf32>
      %c8_20 = arith.constant 8 : index
      %c0_21 = arith.constant 0 : index
      %38 = vector.load %arg6[%c8_20, %c0_21] : memref<16x128xf32, #tpu.memory_space<vmem>>, vector<8x128xf32>
      tpu.vector_store %arg6[%c8_20, %c0_21], %37 {strides = array<i32>} : memref<16x128xf32, #tpu.memory_space<vmem>>, vector<8x128xf32>,
      %c117_i32 = arith.constant 117 : i32
      %39 = tpu.dynamic_rotate %15 by %c117_i32 dim 1 : vector<8x128xf32>, i32 -> vector<8x128xf32>
      %40 = vector.extract_strided_slice %16 {offsets = [0, 2], sizes = [8, 1], strides = [1, 1]} : vector<16x9xf32> to vector<8x1xf32>
      %41 = vector.broadcast %40 : vector<8x1xf32> to vector<8x128xf32>
      %42 = arith.mulf %41, %39 : vector<8x128xf32>
      %c0_22 = arith.constant 0 : index
      %c0_23 = arith.constant 0 : index
      %43 = vector.load %arg6[%c0_22, %c0_23] : memref<16x128xf32, #tpu.memory_space<vmem>>, vector<8x128xf32>
      %44 = arith.addf %43, %42 : vector<8x128xf32>
      %c0_24 = arith.constant 0 : index
      %c0_25 = arith.constant 0 : index
      %45 = vector.load %arg6[%c0_24, %c0_25] : memref<16x128xf32, #tpu.memory_space<vmem>>, vector<8x128xf32>
      tpu.vector_store %arg6[%c0_24, %c0_25], %44 {strides = array<i32>} : memref<16x128xf32, #tpu.memory_space<vmem>>, vector<8x128xf32>,
      %46 = vector.extract_strided_slice %16 {offsets = [8, 2], sizes = [8, 1], strides = [1, 1]} : vector<16x9xf32> to vector<8x1xf32>
      %47 = vector.broadcast %46 : vector<8x1xf32> to vector<8x128xf32>
      %48 = arith.mulf %47, %39 : vector<8x128xf32>
      %c8_26 = arith.constant 8 : index
      %c0_27 = arith.constant 0 : index
      %49 = vector.load %arg6[%c8_26, %c0_27] : memref<16x128xf32, #tpu.memory_space<vmem>>, vector<8x128xf32>
      %50 = arith.addf %49, %48 : vector<8x128xf32>
      %c8_28 = arith.constant 8 : index
      %c0_29 = arith.constant 0 : index
      %51 = vector.load %arg6[%c8_28, %c0_29] : memref<16x128xf32, #tpu.memory_space<vmem>>, vector<8x128xf32>
      tpu.vector_store %arg6[%c8_28, %c0_29], %50 {strides = array<i32>} : memref<16x128xf32, #tpu.memory_space<vmem>>, vector<8x128xf32>,
      %c116_i32 = arith.constant 116 : i32
      %52 = tpu.dynamic_rotate %15 by %c116_i32 dim 1 : vector<8x128xf32>, i32 -> vector<8x128xf32>
      %53 = vector.extract_strided_slice %16 {offsets = [0, 3], sizes = [8, 1], strides = [1, 1]} : vector<16x9xf32> to vector<8x1xf32>
      %54 = vector.broadcast %53 : vector<8x1xf32> to vector<8x128xf32>
      %55 = arith.mulf %54, %52 : vector<8x128xf32>
      %c0_30 = arith.constant 0 : index
      %c0_31 = arith.constant 0 : index
      %56 = vector.load %arg6[%c0_30, %c0_31] : memref<16x128xf32, #tpu.memory_space<vmem>>, vector<8x128xf32>
      %57 = arith.addf %56, %55 : vector<8x128xf32>
      %c0_32 = arith.constant 0 : index
      %c0_33 = arith.constant 0 : index
      %58 = vector.load %arg6[%c0_32, %c0_33] : memref<16x128xf32, #tpu.memory_space<vmem>>, vector<8x128xf32>
      tpu.vector_store %arg6[%c0_32, %c0_33], %57 {strides = array<i32>} : memref<16x128xf32, #tpu.memory_space<vmem>>, vector<8x128xf32>,
      %59 = vector.extract_strided_slice %16 {offsets = [8, 3], sizes = [8, 1], strides = [1, 1]} : vector<16x9xf32> to vector<8x1xf32>
      %60 = vector.broadcast %59 : vector<8x1xf32> to vector<8x128xf32>
      %61 = arith.mulf %60, %52 : vector<8x128xf32>
      %c8_34 = arith.constant 8 : index
      %c0_35 = arith.constant 0 : index
      %62 = vector.load %arg6[%c8_34, %c0_35] : memref<16x128xf32, #tpu.memory_space<vmem>>, vector<8x128xf32>
      %63 = arith.addf %62, %61 : vector<8x128xf32>
      %c8_36 = arith.constant 8 : index
      %c0_37 = arith.constant 0 : index
      %64 = vector.load %arg6[%c8_36, %c0_37] : memref<16x128xf32, #tpu.memory_space<vmem>>, vector<8x128xf32>
      tpu.vector_store %arg6[%c8_36, %c0_37], %63 {strides = array<i32>} : memref<16x128xf32, #tpu.memory_space<vmem>>, vector<8x128xf32>,
      %c115_i32 = arith.constant 115 : i32
      %65 = tpu.dynamic_rotate %15 by %c115_i32 dim 1 : vector<8x128xf32>, i32 -> vector<8x128xf32>
      %66 = vector.extract_strided_slice %16 {offsets = [0, 4], sizes = [8, 1], strides = [1, 1]} : vector<16x9xf32> to vector<8x1xf32>
      %67 = vector.broadcast %66 : vector<8x1xf32> to vector<8x128xf32>
      %68 = arith.mulf %67, %65 : vector<8x128xf32>
      %c0_38 = arith.constant 0 : index
      %c0_39 = arith.constant 0 : index
      %69 = vector.load %arg6[%c0_38, %c0_39] : memref<16x128xf32, #tpu.memory_space<vmem>>, vector<8x128xf32>
      %70 = arith.addf %69, %68 : vector<8x128xf32>
      %c0_40 = arith.constant 0 : index
      %c0_41 = arith.constant 0 : index
      %71 = vector.load %arg6[%c0_40, %c0_41] : memref<16x128xf32, #tpu.memory_space<vmem>>, vector<8x128xf32>
      tpu.vector_store %arg6[%c0_40, %c0_41], %70 {strides = array<i32>} : memref<16x128xf32, #tpu.memory_space<vmem>>, vector<8x128xf32>,
      %72 = vector.extract_strided_slice %16 {offsets = [8, 4], sizes = [8, 1], strides = [1, 1]} : vector<16x9xf32> to vector<8x1xf32>
      %73 = vector.broadcast %72 : vector<8x1xf32> to vector<8x128xf32>
      %74 = arith.mulf %73, %65 : vector<8x128xf32>
      %c8_42 = arith.constant 8 : index
      %c0_43 = arith.constant 0 : index
      %75 = vector.load %arg6[%c8_42, %c0_43] : memref<16x128xf32, #tpu.memory_space<vmem>>, vector<8x128xf32>
      %76 = arith.addf %75, %74 : vector<8x128xf32>
      %c8_44 = arith.constant 8 : index
      %c0_45 = arith.constant 0 : index
      %77 = vector.load %arg6[%c8_44, %c0_45] : memref<16x128xf32, #tpu.memory_space<vmem>>, vector<8x128xf32>
      tpu.vector_store %arg6[%c8_44, %c0_45], %76 {strides = array<i32>} : memref<16x128xf32, #tpu.memory_space<vmem>>, vector<8x128xf32>,
      %c114_i32 = arith.constant 114 : i32
      %78 = tpu.dynamic_rotate %15 by %c114_i32 dim 1 : vector<8x128xf32>, i32 -> vector<8x128xf32>
      %79 = vector.extract_strided_slice %16 {offsets = [0, 5], sizes = [8, 1], strides = [1, 1]} : vector<16x9xf32> to vector<8x1xf32>
      %80 = vector.broadcast %79 : vector<8x1xf32> to vector<8x128xf32>
      %81 = arith.mulf %80, %78 : vector<8x128xf32>
      %c0_46 = arith.constant 0 : index
      %c0_47 = arith.constant 0 : index
      %82 = vector.load %arg6[%c0_46, %c0_47] : memref<16x128xf32, #tpu.memory_space<vmem>>, vector<8x128xf32>
      %83 = arith.addf %82, %81 : vector<8x128xf32>
      %c0_48 = arith.constant 0 : index
      %c0_49 = arith.constant 0 : index
      %84 = vector.load %arg6[%c0_48, %c0_49] : memref<16x128xf32, #tpu.memory_space<vmem>>, vector<8x128xf32>
      tpu.vector_store %arg6[%c0_48, %c0_49], %83 {strides = array<i32>} : memref<16x128xf32, #tpu.memory_space<vmem>>, vector<8x128xf32>,
      %85 = vector.extract_strided_slice %16 {offsets = [8, 5], sizes = [8, 1], strides = [1, 1]} : vector<16x9xf32> to vector<8x1xf32>
      %86 = vector.broadcast %85 : vector<8x1xf32> to vector<8x128xf32>
      %87 = arith.mulf %86, %78 : vector<8x128xf32>
      %c8_50 = arith.constant 8 : index
      %c0_51 = arith.constant 0 : index
      %88 = vector.load %arg6[%c8_50, %c0_51] : memref<16x128xf32, #tpu.memory_space<vmem>>, vector<8x128xf32>
      %89 = arith.addf %88, %87 : vector<8x128xf32>
      %c8_52 = arith.constant 8 : index
      %c0_53 = arith.constant 0 : index
      %90 = vector.load %arg6[%c8_52, %c0_53] : memref<16x128xf32, #tpu.memory_space<vmem>>, vector<8x128xf32>
      tpu.vector_store %arg6[%c8_52, %c0_53], %89 {strides = array<i32>} : memref<16x128xf32, #tpu.memory_space<vmem>>, vector<8x128xf32>,
      %c113_i32 = arith.constant 113 : i32
      %91 = tpu.dynamic_rotate %15 by %c113_i32 dim 1 : vector<8x128xf32>, i32 -> vector<8x128xf32>
      %92 = vector.extract_strided_slice %16 {offsets = [0, 6], sizes = [8, 1], strides = [1, 1]} : vector<16x9xf32> to vector<8x1xf32>
      %93 = vector.broadcast %92 : vector<8x1xf32> to vector<8x128xf32>
      %94 = arith.mulf %93, %91 : vector<8x128xf32>
      %c0_54 = arith.constant 0 : index
      %c0_55 = arith.constant 0 : index
      %95 = vector.load %arg6[%c0_54, %c0_55] : memref<16x128xf32, #tpu.memory_space<vmem>>, vector<8x128xf32>
      %96 = arith.addf %95, %94 : vector<8x128xf32>
      %c0_56 = arith.constant 0 : index
      %c0_57 = arith.constant 0 : index
      %97 = vector.load %arg6[%c0_56, %c0_57] : memref<16x128xf32, #tpu.memory_space<vmem>>, vector<8x128xf32>
      tpu.vector_store %arg6[%c0_56, %c0_57], %96 {strides = array<i32>} : memref<16x128xf32, #tpu.memory_space<vmem>>, vector<8x128xf32>,
      %98 = vector.extract_strided_slice %16 {offsets = [8, 6], sizes = [8, 1], strides = [1, 1]} : vector<16x9xf32> to vector<8x1xf32>
      %99 = vector.broadcast %98 : vector<8x1xf32> to vector<8x128xf32>
      %100 = arith.mulf %99, %91 : vector<8x128xf32>
      %c8_58 = arith.constant 8 : index
      %c0_59 = arith.constant 0 : index
      %101 = vector.load %arg6[%c8_58, %c0_59] : memref<16x128xf32, #tpu.memory_space<vmem>>, vector<8x128xf32>
      %102 = arith.addf %101, %100 : vector<8x128xf32>
      %c8_60 = arith.constant 8 : index
      %c0_61 = arith.constant 0 : index
      %103 = vector.load %arg6[%c8_60, %c0_61] : memref<16x128xf32, #tpu.memory_space<vmem>>, vector<8x128xf32>
      tpu.vector_store %arg6[%c8_60, %c0_61], %102 {strides = array<i32>} : memref<16x128xf32, #tpu.memory_space<vmem>>, vector<8x128xf32>,
      %c112_i32 = arith.constant 112 : i32
      %104 = tpu.dynamic_rotate %15 by %c112_i32 dim 1 : vector<8x128xf32>, i32 -> vector<8x128xf32>
      %105 = vector.extract_strided_slice %16 {offsets = [0, 7], sizes = [8, 1], strides = [1, 1]} : vector<16x9xf32> to vector<8x1xf32>
      %106 = vector.broadcast %105 : vector<8x1xf32> to vector<8x128xf32>
      %107 = arith.mulf %106, %104 : vector<8x128xf32>
      %c0_62 = arith.constant 0 : index
      %c0_63 = arith.constant 0 : index
      %108 = vector.load %arg6[%c0_62, %c0_63] : memref<16x128xf32, #tpu.memory_space<vmem>>, vector<8x128xf32>
      %109 = arith.addf %108, %107 : vector<8x128xf32>
      %c0_64 = arith.constant 0 : index
      %c0_65 = arith.constant 0 : index
      %110 = vector.load %arg6[%c0_64, %c0_65] : memref<16x128xf32, #tpu.memory_space<vmem>>, vector<8x128xf32>
      tpu.vector_store %arg6[%c0_64, %c0_65], %109 {strides = array<i32>} : memref<16x128xf32, #tpu.memory_space<vmem>>, vector<8x128xf32>,
      %111 = vector.extract_strided_slice %16 {offsets = [8, 7], sizes = [8, 1], strides = [1, 1]} : vector<16x9xf32> to vector<8x1xf32>
      %112 = vector.broadcast %111 : vector<8x1xf32> to vector<8x128xf32>
      %113 = arith.mulf %112, %104 : vector<8x128xf32>
      %c8_66 = arith.constant 8 : index
      %c0_67 = arith.constant 0 : index
      %114 = vector.load %arg6[%c8_66, %c0_67] : memref<16x128xf32, #tpu.memory_space<vmem>>, vector<8x128xf32>
      %115 = arith.addf %114, %113 : vector<8x128xf32>
      %c8_68 = arith.constant 8 : index
      %c0_69 = arith.constant 0 : index
      %116 = vector.load %arg6[%c8_68, %c0_69] : memref<16x128xf32, #tpu.memory_space<vmem>>, vector<8x128xf32>
      tpu.vector_store %arg6[%c8_68, %c0_69], %115 {strides = array<i32>} : memref<16x128xf32, #tpu.memory_space<vmem>>, vector<8x128xf32>,
      %c111_i32 = arith.constant 111 : i32
      %117 = tpu.dynamic_rotate %15 by %c111_i32 dim 1 : vector<8x128xf32>, i32 -> vector<8x128xf32>
      %118 = vector.extract_strided_slice %16 {offsets = [0, 8], sizes = [8, 1], strides = [1, 1]} : vector<16x9xf32> to vector<8x1xf32>
      %119 = vector.broadcast %118 : vector<8x1xf32> to vector<8x128xf32>
      %120 = arith.mulf %119, %117 : vector<8x128xf32>
      %c0_70 = arith.constant 0 : index
      %c0_71 = arith.constant 0 : index
      %121 = vector.load %arg6[%c0_70, %c0_71] : memref<16x128xf32, #tpu.memory_space<vmem>>, vector<8x128xf32>
      %122 = arith.addf %121, %120 : vector<8x128xf32>
      %c0_72 = arith.constant 0 : index
      %c0_73 = arith.constant 0 : index
      %123 = vector.load %arg6[%c0_72, %c0_73] : memref<16x128xf32, #tpu.memory_space<vmem>>, vector<8x128xf32>
      tpu.vector_store %arg6[%c0_72, %c0_73], %122 {strides = array<i32>} : memref<16x128xf32, #tpu.memory_space<vmem>>, vector<8x128xf32>,
      %124 = vector.extract_strided_slice %16 {offsets = [8, 8], sizes = [8, 1], strides = [1, 1]} : vector<16x9xf32> to vector<8x1xf32>
      %125 = vector.broadcast %124 : vector<8x1xf32> to vector<8x128xf32>
      %126 = arith.mulf %125, %117 : vector<8x128xf32>
      %c8_74 = arith.constant 8 : index
      %c0_75 = arith.constant 0 : index
      %127 = vector.load %arg6[%c8_74, %c0_75] : memref<16x128xf32, #tpu.memory_space<vmem>>, vector<8x128xf32>
      %128 = arith.addf %127, %126 : vector<8x128xf32>
      %c8_76 = arith.constant 8 : index
      %c0_77 = arith.constant 0 : index
      %129 = vector.load %arg6[%c8_76, %c0_77] : memref<16x128xf32, #tpu.memory_space<vmem>>, vector<8x128xf32>
      tpu.vector_store %arg6[%c8_76, %c0_77], %128 {strides = array<i32>} : memref<16x128xf32, #tpu.memory_space<vmem>>, vector<8x128xf32>,
      %c0_78 = arith.constant 0 : index
      %c0_79 = arith.constant 0 : index
      %130 = vector.load %arg6[%c0_78, %c0_79] : memref<16x128xf32, #tpu.memory_space<vmem>>, vector<16x128xf32>
      %131 = arith.truncf %130 : vector<16x128xf32> to vector<16x128xbf16>
      %c0_80 = arith.constant 0 : index
      %c0_81 = arith.constant 0 : index
      %132 = vector.load %arg7[%c0_80, %c0_81] : memref<16x128xbf16, #tpu.memory_space<vmem>>, vector<16x128xbf16>
      tpu.vector_store %arg7[%c0_80, %c0_81], %131 {strides = array<i32>} : memref<16x128xbf16, #tpu.memory_space<vmem>>, vector<16x128xbf16>,
    } else {
    }
    %c0 = arith.constant 0 : index
    %c0_1 = arith.constant 0 : index
    %3 = vector.load %arg7[%c0, %c0_1] : memref<16x128xbf16, #tpu.memory_space<vmem>>, vector<16x128xbf16>
    %c0_2 = arith.constant 0 : index
    %c0_3 = arith.constant 0 : index
    %4 = vector.load %arg4[%c0_2, %c0_3] : memref<128x128xbf16, #tpu.memory_space<vmem>>, vector<128x128xbf16>
    %cst = arith.constant dense<0.000000e+00> : vector<16x128xf32>
    %5 = tpu.matmul %3, %4, %cst {dimension_numbers = #tpu.dot_dimension_numbers<[1], [0], [0], [1], [0, 0, 1, 1], [], []>} : vector<16x128xbf16>, vector<128x128xbf16>, vector<16x128xf32> -> vector<16x128xf32>
    %c128_i32 = arith.constant 128 : i32
    %6 = arith.muli %arg1, %c128_i32 : i32
    %7 = tpu.assume_multiple %6, 128 : i32
    %c0_4 = arith.constant 0 : index
    %8 = arith.index_cast %7 : i32 to index
    %9 = vector.load %arg6[%c0_4, %8] : memref<16x128xf32, #tpu.memory_space<vmem>>, vector<16x128xf32>
    %10 = arith.mulf %9, %9 : vector<16x128xf32>
    %11 = arith.mulf %5, %5 : vector<16x128xf32>
    %12 = arith.addf %10, %11 : vector<16x128xf32>
    %13 = math.sqrt %12 : vector<16x128xf32>
    %c0_5 = arith.constant 0 : index
    %c0_6 = arith.constant 0 : index
    %14 = vector.load %arg5[%c0_5, %c0_6] : memref<16x128xf32, #tpu.memory_space<vmem>>, vector<16x128xf32>
    tpu.vector_store %arg5[%c0_5, %c0_6], %13 {strides = array<i32>} : memref<16x128xf32, #tpu.memory_space<vmem>>, vector<16x128xf32>,
    return
  }
  func.func @transform_0(%arg0: i32, %arg1: i32) -> (i32, i32) {
    %c0_i32 = arith.constant 0 : i32
    %c0_i32_0 = arith.constant 0 : i32
    return %arg0, %c0_i32 : i32, i32
  }
  func.func @transform_1(%arg0: i32, %arg1: i32) -> (i32, i32) {
    %c0_i32 = arith.constant 0 : i32
    %c0_i32_0 = arith.constant 0 : i32
    return %arg0, %c0_i32 : i32, i32
  }
  func.func @transform_2(%arg0: i32, %arg1: i32) -> (i32, i32) {
    %c0_i32 = arith.constant 0 : i32
    %c0_i32_0 = arith.constant 0 : i32
    return %c0_i32, %arg1 : i32, i32
  }
  func.func @transform_3(%arg0: i32, %arg1: i32) -> (i32, i32) {
    %c0_i32 = arith.constant 0 : i32
    return %arg0, %arg1 : i32, i32
  }
}

module attributes {stable_mosaic.version = 11 : i64} {
  func.func @_sinc_hilbert_kernel(%arg0: i32, %arg1: i32, %arg2: memref<8x128xf32, #tpu.memory_space<vmem>>, %arg3: memref<16x9xf32, #tpu.memory_space<vmem>>, %arg4: memref<128x128xbf16, #tpu.memory_space<vmem>>, %arg5: memref<16x128xf32, #tpu.memory_space<vmem>>, %arg6: memref<16x128xf32, #tpu.memory_space<vmem>>, %arg7: memref<16x128xbf16, #tpu.memory_space<vmem>>) attributes {dimension_semantics = [#tpu.dimension_semantics<parallel>, #tpu.dimension_semantics<arbitrary>], iteration_bounds = array<i64: 1, 1>, scalar_prefetch = 0 : i64, scratch_operands = 2 : i64, tpu.core_type = #tpu.core_type<tc>, window_params = [{transform_indices = @transform_0, window_bounds = array<i64: 8, 128>}, {transform_indices = @transform_1, window_bounds = array<i64: 16, 9>}, {transform_indices = @transform_2, window_bounds = array<i64: 128, 128>}, {transform_indices = @transform_3, window_bounds = array<i64: 16, 128>}]} {
    %c0_i32 = arith.constant 0 : i32
    %0 = arith.cmpi eq, %arg1, %c0_i32 : i32
    %1 = arith.extui %0 : i1 to i32
    %c0_i32_0 = arith.constant 0 : i32
    %2 = arith.cmpi ne, %1, %c0_i32_0 : i32
    scf.if %2 {
      %c0_7 = arith.constant 0 : index
      %c0_8 = arith.constant 0 : index
      %15 = vector.load %arg2[%c0_7, %c0_8] : memref<8x128xf32, #tpu.memory_space<vmem>>, vector<8x128xf32>
      %c0_9 = arith.constant 0 : index
      %c0_10 = arith.constant 0 : index
      %16 = vector.load %arg3[%c0_9, %c0_10] : memref<16x9xf32, #tpu.memory_space<vmem>>, vector<16x9xf32>
      %c119_i32 = arith.constant 119 : i32
      %17 = tpu.dynamic_rotate %15 by %c119_i32 dim 1 : vector<8x128xf32>, i32 -> vector<8x128xf32>
      %18 = vector.extract_strided_slice %16 {offsets = [0, 0], sizes = [8, 1], strides = [1, 1]} : vector<16x9xf32> to vector<8x1xf32>
      %19 = vector.broadcast %18 : vector<8x1xf32> to vector<8x128xf32>
      %20 = arith.mulf %19, %17 : vector<8x128xf32>
      %c0_11 = arith.constant 0 : index
      %c0_12 = arith.constant 0 : index
      %21 = vector.load %arg6[%c0_11, %c0_12] : memref<16x128xf32, #tpu.memory_space<vmem>>, vector<8x128xf32>
      tpu.vector_store %arg6[%c0_11, %c0_12], %20 {strides = array<i32>} : memref<16x128xf32, #tpu.memory_space<vmem>>, vector<8x128xf32>,
      %22 = vector.extract_strided_slice %16 {offsets = [8, 0], sizes = [8, 1], strides = [1, 1]} : vector<16x9xf32> to vector<8x1xf32>
      %23 = vector.broadcast %22 : vector<8x1xf32> to vector<8x128xf32>
      %24 = arith.mulf %23, %17 : vector<8x128xf32>
      %c8 = arith.constant 8 : index
      %c0_13 = arith.constant 0 : index
      %25 = vector.load %arg6[%c8, %c0_13] : memref<16x128xf32, #tpu.memory_space<vmem>>, vector<8x128xf32>
      tpu.vector_store %arg6[%c8, %c0_13], %24 {strides = array<i32>} : memref<16x128xf32, #tpu.memory_space<vmem>>, vector<8x128xf32>,
      %c118_i32 = arith.constant 118 : i32
      %26 = tpu.dynamic_rotate %15 by %c118_i32 dim 1 : vector<8x128xf32>, i32 -> vector<8x128xf32>
      %27 = vector.extract_strided_slice %16 {offsets = [0, 1], sizes = [8, 1], strides = [1, 1]} : vector<16x9xf32> to vector<8x1xf32>
      %28 = vector.broadcast %27 : vector<8x1xf32> to vector<8x128xf32>
      %29 = arith.mulf %28, %26 : vector<8x128xf32>
      %c0_14 = arith.constant 0 : index
      %c0_15 = arith.constant 0 : index
      %30 = vector.load %arg6[%c0_14, %c0_15] : memref<16x128xf32, #tpu.memory_space<vmem>>, vector<8x128xf32>
      %31 = arith.addf %30, %29 : vector<8x128xf32>
      %c0_16 = arith.constant 0 : index
      %c0_17 = arith.constant 0 : index
      %32 = vector.load %arg6[%c0_16, %c0_17] : memref<16x128xf32, #tpu.memory_space<vmem>>, vector<8x128xf32>
      tpu.vector_store %arg6[%c0_16, %c0_17], %31 {strides = array<i32>} : memref<16x128xf32, #tpu.memory_space<vmem>>, vector<8x128xf32>,
      %33 = vector.extract_strided_slice %16 {offsets = [8, 1], sizes = [8, 1], strides = [1, 1]} : vector<16x9xf32> to vector<8x1xf32>
      %34 = vector.broadcast %33 : vector<8x1xf32> to vector<8x128xf32>
      %35 = arith.mulf %34, %26 : vector<8x128xf32>
      %c8_18 = arith.constant 8 : index
      %c0_19 = arith.constant 0 : index
      %36 = vector.load %arg6[%c8_18, %c0_19] : memref<16x128xf32, #tpu.memory_space<vmem>>, vector<8x128xf32>
      %37 = arith.addf %36, %35 : vector<8x128xf32>
      %c8_20 = arith.constant 8 : index
      %c0_21 = arith.constant 0 : index
      %38 = vector.load %arg6[%c8_20, %c0_21] : memref<16x128xf32, #tpu.memory_space<vmem>>, vector<8x128xf32>
      tpu.vector_store %arg6[%c8_20, %c0_21], %37 {strides = array<i32>} : memref<16x128xf32, #tpu.memory_space<vmem>>, vector<8x128xf32>,
      %c117_i32 = arith.constant 117 : i32
      %39 = tpu.dynamic_rotate %15 by %c117_i32 dim 1 : vector<8x128xf32>, i32 -> vector<8x128xf32>
      %40 = vector.extract_strided_slice %16 {offsets = [0, 2], sizes = [8, 1], strides = [1, 1]} : vector<16x9xf32> to vector<8x1xf32>
      %41 = vector.broadcast %40 : vector<8x1xf32> to vector<8x128xf32>
      %42 = arith.mulf %41, %39 : vector<8x128xf32>
      %c0_22 = arith.constant 0 : index
      %c0_23 = arith.constant 0 : index
      %43 = vector.load %arg6[%c0_22, %c0_23] : memref<16x128xf32, #tpu.memory_space<vmem>>, vector<8x128xf32>
      %44 = arith.addf %43, %42 : vector<8x128xf32>
      %c0_24 = arith.constant 0 : index
      %c0_25 = arith.constant 0 : index
      %45 = vector.load %arg6[%c0_24, %c0_25] : memref<16x128xf32, #tpu.memory_space<vmem>>, vector<8x128xf32>
      tpu.vector_store %arg6[%c0_24, %c0_25], %44 {strides = array<i32>} : memref<16x128xf32, #tpu.memory_space<vmem>>, vector<8x128xf32>,
      %46 = vector.extract_strided_slice %16 {offsets = [8, 2], sizes = [8, 1], strides = [1, 1]} : vector<16x9xf32> to vector<8x1xf32>
      %47 = vector.broadcast %46 : vector<8x1xf32> to vector<8x128xf32>
      %48 = arith.mulf %47, %39 : vector<8x128xf32>
      %c8_26 = arith.constant 8 : index
      %c0_27 = arith.constant 0 : index
      %49 = vector.load %arg6[%c8_26, %c0_27] : memref<16x128xf32, #tpu.memory_space<vmem>>, vector<8x128xf32>
      %50 = arith.addf %49, %48 : vector<8x128xf32>
      %c8_28 = arith.constant 8 : index
      %c0_29 = arith.constant 0 : index
      %51 = vector.load %arg6[%c8_28, %c0_29] : memref<16x128xf32, #tpu.memory_space<vmem>>, vector<8x128xf32>
      tpu.vector_store %arg6[%c8_28, %c0_29], %50 {strides = array<i32>} : memref<16x128xf32, #tpu.memory_space<vmem>>, vector<8x128xf32>,
      %c116_i32 = arith.constant 116 : i32
      %52 = tpu.dynamic_rotate %15 by %c116_i32 dim 1 : vector<8x128xf32>, i32 -> vector<8x128xf32>
      %53 = vector.extract_strided_slice %16 {offsets = [0, 3], sizes = [8, 1], strides = [1, 1]} : vector<16x9xf32> to vector<8x1xf32>
      %54 = vector.broadcast %53 : vector<8x1xf32> to vector<8x128xf32>
      %55 = arith.mulf %54, %52 : vector<8x128xf32>
      %c0_30 = arith.constant 0 : index
      %c0_31 = arith.constant 0 : index
      %56 = vector.load %arg6[%c0_30, %c0_31] : memref<16x128xf32, #tpu.memory_space<vmem>>, vector<8x128xf32>
      %57 = arith.addf %56, %55 : vector<8x128xf32>
      %c0_32 = arith.constant 0 : index
      %c0_33 = arith.constant 0 : index
      %58 = vector.load %arg6[%c0_32, %c0_33] : memref<16x128xf32, #tpu.memory_space<vmem>>, vector<8x128xf32>
      tpu.vector_store %arg6[%c0_32, %c0_33], %57 {strides = array<i32>} : memref<16x128xf32, #tpu.memory_space<vmem>>, vector<8x128xf32>,
      %59 = vector.extract_strided_slice %16 {offsets = [8, 3], sizes = [8, 1], strides = [1, 1]} : vector<16x9xf32> to vector<8x1xf32>
      %60 = vector.broadcast %59 : vector<8x1xf32> to vector<8x128xf32>
      %61 = arith.mulf %60, %52 : vector<8x128xf32>
      %c8_34 = arith.constant 8 : index
      %c0_35 = arith.constant 0 : index
      %62 = vector.load %arg6[%c8_34, %c0_35] : memref<16x128xf32, #tpu.memory_space<vmem>>, vector<8x128xf32>
      %63 = arith.addf %62, %61 : vector<8x128xf32>
      %c8_36 = arith.constant 8 : index
      %c0_37 = arith.constant 0 : index
      %64 = vector.load %arg6[%c8_36, %c0_37] : memref<16x128xf32, #tpu.memory_space<vmem>>, vector<8x128xf32>
      tpu.vector_store %arg6[%c8_36, %c0_37], %63 {strides = array<i32>} : memref<16x128xf32, #tpu.memory_space<vmem>>, vector<8x128xf32>,
      %c115_i32 = arith.constant 115 : i32
      %65 = tpu.dynamic_rotate %15 by %c115_i32 dim 1 : vector<8x128xf32>, i32 -> vector<8x128xf32>
      %66 = vector.extract_strided_slice %16 {offsets = [0, 4], sizes = [8, 1], strides = [1, 1]} : vector<16x9xf32> to vector<8x1xf32>
      %67 = vector.broadcast %66 : vector<8x1xf32> to vector<8x128xf32>
      %68 = arith.mulf %67, %65 : vector<8x128xf32>
      %c0_38 = arith.constant 0 : index
      %c0_39 = arith.constant 0 : index
      %69 = vector.load %arg6[%c0_38, %c0_39] : memref<16x128xf32, #tpu.memory_space<vmem>>, vector<8x128xf32>
      %70 = arith.addf %69, %68 : vector<8x128xf32>
      %c0_40 = arith.constant 0 : index
      %c0_41 = arith.constant 0 : index
      %71 = vector.load %arg6[%c0_40, %c0_41] : memref<16x128xf32, #tpu.memory_space<vmem>>, vector<8x128xf32>
      tpu.vector_store %arg6[%c0_40, %c0_41], %70 {strides = array<i32>} : memref<16x128xf32, #tpu.memory_space<vmem>>, vector<8x128xf32>,
      %72 = vector.extract_strided_slice %16 {offsets = [8, 4], sizes = [8, 1], strides = [1, 1]} : vector<16x9xf32> to vector<8x1xf32>
      %73 = vector.broadcast %72 : vector<8x1xf32> to vector<8x128xf32>
      %74 = arith.mulf %73, %65 : vector<8x128xf32>
      %c8_42 = arith.constant 8 : index
      %c0_43 = arith.constant 0 : index
      %75 = vector.load %arg6[%c8_42, %c0_43] : memref<16x128xf32, #tpu.memory_space<vmem>>, vector<8x128xf32>
      %76 = arith.addf %75, %74 : vector<8x128xf32>
      %c8_44 = arith.constant 8 : index
      %c0_45 = arith.constant 0 : index
      %77 = vector.load %arg6[%c8_44, %c0_45] : memref<16x128xf32, #tpu.memory_space<vmem>>, vector<8x128xf32>
      tpu.vector_store %arg6[%c8_44, %c0_45], %76 {strides = array<i32>} : memref<16x128xf32, #tpu.memory_space<vmem>>, vector<8x128xf32>,
      %c114_i32 = arith.constant 114 : i32
      %78 = tpu.dynamic_rotate %15 by %c114_i32 dim 1 : vector<8x128xf32>, i32 -> vector<8x128xf32>
      %79 = vector.extract_strided_slice %16 {offsets = [0, 5], sizes = [8, 1], strides = [1, 1]} : vector<16x9xf32> to vector<8x1xf32>
      %80 = vector.broadcast %79 : vector<8x1xf32> to vector<8x128xf32>
      %81 = arith.mulf %80, %78 : vector<8x128xf32>
      %c0_46 = arith.constant 0 : index
      %c0_47 = arith.constant 0 : index
      %82 = vector.load %arg6[%c0_46, %c0_47] : memref<16x128xf32, #tpu.memory_space<vmem>>, vector<8x128xf32>
      %83 = arith.addf %82, %81 : vector<8x128xf32>
      %c0_48 = arith.constant 0 : index
      %c0_49 = arith.constant 0 : index
      %84 = vector.load %arg6[%c0_48, %c0_49] : memref<16x128xf32, #tpu.memory_space<vmem>>, vector<8x128xf32>
      tpu.vector_store %arg6[%c0_48, %c0_49], %83 {strides = array<i32>} : memref<16x128xf32, #tpu.memory_space<vmem>>, vector<8x128xf32>,
      %85 = vector.extract_strided_slice %16 {offsets = [8, 5], sizes = [8, 1], strides = [1, 1]} : vector<16x9xf32> to vector<8x1xf32>
      %86 = vector.broadcast %85 : vector<8x1xf32> to vector<8x128xf32>
      %87 = arith.mulf %86, %78 : vector<8x128xf32>
      %c8_50 = arith.constant 8 : index
      %c0_51 = arith.constant 0 : index
      %88 = vector.load %arg6[%c8_50, %c0_51] : memref<16x128xf32, #tpu.memory_space<vmem>>, vector<8x128xf32>
      %89 = arith.addf %88, %87 : vector<8x128xf32>
      %c8_52 = arith.constant 8 : index
      %c0_53 = arith.constant 0 : index
      %90 = vector.load %arg6[%c8_52, %c0_53] : memref<16x128xf32, #tpu.memory_space<vmem>>, vector<8x128xf32>
      tpu.vector_store %arg6[%c8_52, %c0_53], %89 {strides = array<i32>} : memref<16x128xf32, #tpu.memory_space<vmem>>, vector<8x128xf32>,
      %c113_i32 = arith.constant 113 : i32
      %91 = tpu.dynamic_rotate %15 by %c113_i32 dim 1 : vector<8x128xf32>, i32 -> vector<8x128xf32>
      %92 = vector.extract_strided_slice %16 {offsets = [0, 6], sizes = [8, 1], strides = [1, 1]} : vector<16x9xf32> to vector<8x1xf32>
      %93 = vector.broadcast %92 : vector<8x1xf32> to vector<8x128xf32>
      %94 = arith.mulf %93, %91 : vector<8x128xf32>
      %c0_54 = arith.constant 0 : index
      %c0_55 = arith.constant 0 : index
      %95 = vector.load %arg6[%c0_54, %c0_55] : memref<16x128xf32, #tpu.memory_space<vmem>>, vector<8x128xf32>
      %96 = arith.addf %95, %94 : vector<8x128xf32>
      %c0_56 = arith.constant 0 : index
      %c0_57 = arith.constant 0 : index
      %97 = vector.load %arg6[%c0_56, %c0_57] : memref<16x128xf32, #tpu.memory_space<vmem>>, vector<8x128xf32>
      tpu.vector_store %arg6[%c0_56, %c0_57], %96 {strides = array<i32>} : memref<16x128xf32, #tpu.memory_space<vmem>>, vector<8x128xf32>,
      %98 = vector.extract_strided_slice %16 {offsets = [8, 6], sizes = [8, 1], strides = [1, 1]} : vector<16x9xf32> to vector<8x1xf32>
      %99 = vector.broadcast %98 : vector<8x1xf32> to vector<8x128xf32>
      %100 = arith.mulf %99, %91 : vector<8x128xf32>
      %c8_58 = arith.constant 8 : index
      %c0_59 = arith.constant 0 : index
      %101 = vector.load %arg6[%c8_58, %c0_59] : memref<16x128xf32, #tpu.memory_space<vmem>>, vector<8x128xf32>
      %102 = arith.addf %101, %100 : vector<8x128xf32>
      %c8_60 = arith.constant 8 : index
      %c0_61 = arith.constant 0 : index
      %103 = vector.load %arg6[%c8_60, %c0_61] : memref<16x128xf32, #tpu.memory_space<vmem>>, vector<8x128xf32>
      tpu.vector_store %arg6[%c8_60, %c0_61], %102 {strides = array<i32>} : memref<16x128xf32, #tpu.memory_space<vmem>>, vector<8x128xf32>,
      %c112_i32 = arith.constant 112 : i32
      %104 = tpu.dynamic_rotate %15 by %c112_i32 dim 1 : vector<8x128xf32>, i32 -> vector<8x128xf32>
      %105 = vector.extract_strided_slice %16 {offsets = [0, 7], sizes = [8, 1], strides = [1, 1]} : vector<16x9xf32> to vector<8x1xf32>
      %106 = vector.broadcast %105 : vector<8x1xf32> to vector<8x128xf32>
      %107 = arith.mulf %106, %104 : vector<8x128xf32>
      %c0_62 = arith.constant 0 : index
      %c0_63 = arith.constant 0 : index
      %108 = vector.load %arg6[%c0_62, %c0_63] : memref<16x128xf32, #tpu.memory_space<vmem>>, vector<8x128xf32>
      %109 = arith.addf %108, %107 : vector<8x128xf32>
      %c0_64 = arith.constant 0 : index
      %c0_65 = arith.constant 0 : index
      %110 = vector.load %arg6[%c0_64, %c0_65] : memref<16x128xf32, #tpu.memory_space<vmem>>, vector<8x128xf32>
      tpu.vector_store %arg6[%c0_64, %c0_65], %109 {strides = array<i32>} : memref<16x128xf32, #tpu.memory_space<vmem>>, vector<8x128xf32>,
      %111 = vector.extract_strided_slice %16 {offsets = [8, 7], sizes = [8, 1], strides = [1, 1]} : vector<16x9xf32> to vector<8x1xf32>
      %112 = vector.broadcast %111 : vector<8x1xf32> to vector<8x128xf32>
      %113 = arith.mulf %112, %104 : vector<8x128xf32>
      %c8_66 = arith.constant 8 : index
      %c0_67 = arith.constant 0 : index
      %114 = vector.load %arg6[%c8_66, %c0_67] : memref<16x128xf32, #tpu.memory_space<vmem>>, vector<8x128xf32>
      %115 = arith.addf %114, %113 : vector<8x128xf32>
      %c8_68 = arith.constant 8 : index
      %c0_69 = arith.constant 0 : index
      %116 = vector.load %arg6[%c8_68, %c0_69] : memref<16x128xf32, #tpu.memory_space<vmem>>, vector<8x128xf32>
      tpu.vector_store %arg6[%c8_68, %c0_69], %115 {strides = array<i32>} : memref<16x128xf32, #tpu.memory_space<vmem>>, vector<8x128xf32>,
      %c111_i32 = arith.constant 111 : i32
      %117 = tpu.dynamic_rotate %15 by %c111_i32 dim 1 : vector<8x128xf32>, i32 -> vector<8x128xf32>
      %118 = vector.extract_strided_slice %16 {offsets = [0, 8], sizes = [8, 1], strides = [1, 1]} : vector<16x9xf32> to vector<8x1xf32>
      %119 = vector.broadcast %118 : vector<8x1xf32> to vector<8x128xf32>
      %120 = arith.mulf %119, %117 : vector<8x128xf32>
      %c0_70 = arith.constant 0 : index
      %c0_71 = arith.constant 0 : index
      %121 = vector.load %arg6[%c0_70, %c0_71] : memref<16x128xf32, #tpu.memory_space<vmem>>, vector<8x128xf32>
      %122 = arith.addf %121, %120 : vector<8x128xf32>
      %c0_72 = arith.constant 0 : index
      %c0_73 = arith.constant 0 : index
      %123 = vector.load %arg6[%c0_72, %c0_73] : memref<16x128xf32, #tpu.memory_space<vmem>>, vector<8x128xf32>
      tpu.vector_store %arg6[%c0_72, %c0_73], %122 {strides = array<i32>} : memref<16x128xf32, #tpu.memory_space<vmem>>, vector<8x128xf32>,
      %124 = vector.extract_strided_slice %16 {offsets = [8, 8], sizes = [8, 1], strides = [1, 1]} : vector<16x9xf32> to vector<8x1xf32>
      %125 = vector.broadcast %124 : vector<8x1xf32> to vector<8x128xf32>
      %126 = arith.mulf %125, %117 : vector<8x128xf32>
      %c8_74 = arith.constant 8 : index
      %c0_75 = arith.constant 0 : index
      %127 = vector.load %arg6[%c8_74, %c0_75] : memref<16x128xf32, #tpu.memory_space<vmem>>, vector<8x128xf32>
      %128 = arith.addf %127, %126 : vector<8x128xf32>
      %c8_76 = arith.constant 8 : index
      %c0_77 = arith.constant 0 : index
      %129 = vector.load %arg6[%c8_76, %c0_77] : memref<16x128xf32, #tpu.memory_space<vmem>>, vector<8x128xf32>
      tpu.vector_store %arg6[%c8_76, %c0_77], %128 {strides = array<i32>} : memref<16x128xf32, #tpu.memory_space<vmem>>, vector<8x128xf32>,
      %c0_78 = arith.constant 0 : index
      %c0_79 = arith.constant 0 : index
      %130 = vector.load %arg6[%c0_78, %c0_79] : memref<16x128xf32, #tpu.memory_space<vmem>>, vector<16x128xf32>
      %131 = arith.truncf %130 : vector<16x128xf32> to vector<16x128xbf16>
      %c0_80 = arith.constant 0 : index
      %c0_81 = arith.constant 0 : index
      %132 = vector.load %arg7[%c0_80, %c0_81] : memref<16x128xbf16, #tpu.memory_space<vmem>>, vector<16x128xbf16>
      tpu.vector_store %arg7[%c0_80, %c0_81], %131 {strides = array<i32>} : memref<16x128xbf16, #tpu.memory_space<vmem>>, vector<16x128xbf16>,
    } else {
    }
    %c0 = arith.constant 0 : index
    %c0_1 = arith.constant 0 : index
    %3 = vector.load %arg7[%c0, %c0_1] : memref<16x128xbf16, #tpu.memory_space<vmem>>, vector<16x128xbf16>
    %c0_2 = arith.constant 0 : index
    %c0_3 = arith.constant 0 : index
    %4 = vector.load %arg4[%c0_2, %c0_3] : memref<128x128xbf16, #tpu.memory_space<vmem>>, vector<128x128xbf16>
    %cst = arith.constant dense<0.000000e+00> : vector<16x128xf32>
    %5 = tpu.matmul %3, %4, %cst {dimension_numbers = #tpu.dot_dimension_numbers<[1], [0], [0], [1], [0, 0, 1, 1], [], []>} : vector<16x128xbf16>, vector<128x128xbf16>, vector<16x128xf32> -> vector<16x128xf32>
    %c128_i32 = arith.constant 128 : i32
    %6 = arith.muli %arg1, %c128_i32 : i32
    %7 = tpu.assume_multiple %6, 128 : i32
    %c0_4 = arith.constant 0 : index
    %8 = arith.index_cast %7 : i32 to index
    %9 = vector.load %arg6[%c0_4, %8] : memref<16x128xf32, #tpu.memory_space<vmem>>, vector<16x128xf32>
    %10 = arith.mulf %9, %9 : vector<16x128xf32>
    %11 = arith.mulf %5, %5 : vector<16x128xf32>
    %12 = arith.addf %10, %11 : vector<16x128xf32>
    %13 = math.sqrt %12 : vector<16x128xf32>
    %c0_5 = arith.constant 0 : index
    %c0_6 = arith.constant 0 : index
    %14 = vector.load %arg5[%c0_5, %c0_6] : memref<16x128xf32, #tpu.memory_space<vmem>>, vector<16x128xf32>
    tpu.vector_store %arg5[%c0_5, %c0_6], %13 {strides = array<i32>} : memref<16x128xf32, #tpu.memory_space<vmem>>, vector<16x128xf32>,
    return
  }
  func.func @transform_0(%arg0: i32, %arg1: i32) -> (i32, i32) {
    %c0_i32 = arith.constant 0 : i32
    %c0_i32_0 = arith.constant 0 : i32
    return %arg0, %c0_i32 : i32, i32
  }
  func.func @transform_1(%arg0: i32, %arg1: i32) -> (i32, i32) {
    %c0_i32 = arith.constant 0 : i32
    %c0_i32_0 = arith.constant 0 : i32
    return %arg0, %c0_i32 : i32, i32
  }
  func.func @transform_2(%arg0: i32, %arg1: i32) -> (i32, i32) {
    %c0_i32 = arith.constant 0 : i32
    %c0_i32_0 = arith.constant 0 : i32
    return %c0_i32, %arg1 : i32, i32
  }
  func.func @transform_3(%arg0: i32, %arg1: i32) -> (i32, i32) {
    %c0_i32 = arith.constant 0 : i32
    return %arg0, %arg1 : i32, i32
  }
}

</mosaic_0001>

<llo_original>
// kernel: tpu_custom_call.1
$region0: #{tpu_custom_call.1}
  #allocation0 [shape = 'u32[]', space=smem, size = 0x4, offset = 0x4, fixed_abs, tag = 'smem constant byte address 0x4 - core index']
  #allocation1 [shape = 'u32[72,128]{1,0:T(1,128)}', space=vmem, size = 0x9000, scoped, tag = 'internal scratch']
  #allocation2 [shape = 'f32[16,128]{1,0:T(8,128)}', space=vmem, size = 0x2000, scoped, tag = 'scratch operand']
  #allocation3 [shape = 'bf16[16,128]{1,0:T(8,128)(2,1)}', space=vmem, size = 0x1000, scoped, tag = 'scratch operand']
  %s0 = inlined_call_operand.hbm [shape: f32[8,128], index: 0, kind: input, shape index: {}]
  %s1 = inlined_call_operand.hbm [shape: f32[16,9], index: 1, kind: input, shape index: {}]
  %s2 = inlined_call_operand.hbm [shape: bf16[128,128], index: 2, kind: input, shape index: {}]
  %s3 = inlined_call_operand.hbm [shape: f32[16,128], index: 3, kind: output, shape index: {}]
  %s4 = sld [smem:[#allocation0]]
  $region38: #{tpu_custom_call.1} parent=0
    _
  %s6 = ssub.s32 1, %s4
  %s7 = scalar_select 0, %s6, %s4
  $region1: #{tpu_custom_call.1} parent=0
    #allocation4 [shape = 'u8[4096]{0}', space=vmem, size = 0x1000, scoped, tag = 'input window, operand 0, single buffered']
    #allocation5 [shape = 's32[1]{0}', space=sflag, size = 0x4, scoped, tag = 'scoped memory for tpu_custom_call.1']
    #allocation6 [shape = 's32[1]{0}', space=sflag, size = 0x4, scoped, tag = 'scoped memory for tpu_custom_call.1']
    #allocation7 [shape = 'u8[8192]{0}', space=vmem, size = 0x2000, scoped, tag = 'input window, operand 1, single buffered']
    #allocation8 [shape = 's32[1]{0}', space=sflag, size = 0x4, scoped, tag = 'scoped memory for tpu_custom_call.1']
    #allocation9 [shape = 'u8[32768]{0}', space=vmem, size = 0x8000, scoped, tag = 'input window, operand 2, single buffered']
    #allocation10 [shape = 'u8[8192]{0}', space=vmem, size = 0x2000, scoped, tag = 'output window, operand 0, single buffered']
    %8 = vsyncpa [#allocation5], 0
    %9 = vsyncpa [#allocation8], 0
    %10 = vsyncpa [#allocation6], 0
    // Predicated region
    $region2: #{tpu_custom_call.1} parent=1 // pred_check
      _
    $region3: #{tpu_custom_call.1} parent=1 // pred_check_branch
      %12 = sbr.rel (0) target = $region5
    $region4: #{tpu_custom_call.1} parent=1 // pred_region
      %14 = vsyncadd [#allocation5], 0
      %s16 = sshll.u32 %s0, 4
      %s17 = int_to_ptr.hbm [resolvable:$true] %s16
      %s18 = sshll.u32 [#allocation4], 4
      %s19 = int_to_ptr.vmem [resolvable:$true] %s18
      %21 = dma.hbm_to_vmem [thread:$0]  %s17, 128, %s19, [#allocation5]
    $region5: #{tpu_custom_call.1} parent=1 // pred_fallthru
      _
    // Predicated region
    $region6: #{tpu_custom_call.1} parent=1 // pred_check
      _
    $region7: #{tpu_custom_call.1} parent=1 // pred_check_branch
      %23 = sbr.rel (0) target = $region9
    $region8: #{tpu_custom_call.1} parent=1 // pred_region
      %25 = vsyncadd [#allocation8], 0
      %s26 = sshll.u32 %s1, 4
      %s27 = int_to_ptr.hbm [resolvable:$true] %s26
      %s28 = sshll.u32 [#allocation7], 4
      %s29 = int_to_ptr.vmem [resolvable:$true] %s28
      %34 = dma.hbm_to_vmem [thread:$0]  %s27, 256, %s29, [#allocation8], 128, 128, 8
    $region9: #{tpu_custom_call.1} parent=1 // pred_fallthru
      _
    // Predicated region
    $region10: #{tpu_custom_call.1} parent=1 // pred_check
      _
    $region11: #{tpu_custom_call.1} parent=1 // pred_check_branch
      %36 = sbr.rel (0) target = $region13
    $region12: #{tpu_custom_call.1} parent=1 // pred_region
      %38 = vsyncadd [#allocation8], 0
      %s39 = sshll.u32 %s2, 4
      %s40 = int_to_ptr.hbm [resolvable:$true] %s39
      %s41 = sshll.u32 [#allocation9], 4
      %s42 = int_to_ptr.vmem [resolvable:$true] %s41
      %47 = dma.hbm_to_vmem [thread:$0]  %s40, 1024, %s42, [#allocation8], 64, 64, 4
    $region13: #{tpu_custom_call.1} parent=1 // pred_fallthru
      _
    // Predicated region
    $region14: #{tpu_custom_call.1} parent=1 // pred_check
      _
    $region15: #{tpu_custom_call.1} parent=1 // pred_check_branch
      %49 = sbr.rel (0) target = $region17
    $region16: #{tpu_custom_call.1} parent=1 // pred_region
      %51 = dma.done [#allocation5], 128
    $region17: #{tpu_custom_call.1} parent=1 // pred_fallthru
      _
    // Predicated region
    $region18: #{tpu_custom_call.1} parent=1 // pred_check
      _
    $region19: #{tpu_custom_call.1} parent=1 // pred_check_branch
      %53 = sbr.rel (0) target = $region21
    $region20: #{tpu_custom_call.1} parent=1 // pred_region
      %55 = dma.done [#allocation8], 256
    $region21: #{tpu_custom_call.1} parent=1 // pred_fallthru
      _
    // Predicated region
    $region22: #{tpu_custom_call.1} parent=1 // pred_check
      _
    $region23: #{tpu_custom_call.1} parent=1 // pred_check_branch
      %57 = sbr.rel (0) target = $region25
    $region24: #{tpu_custom_call.1} parent=1 // pred_region
      %59 = dma.done [#allocation8], 1024
    $region25: #{tpu_custom_call.1} parent=1 // pred_fallthru
      _
    %p60 = scmp.eq.s32.totalorder 0, 0
    // Predicated region
    $region26: #{tpu_custom_call.1} parent=1 // pred_check
      %p61 = pneg %p60
    $region27: #{tpu_custom_call.1} parent=1 // pred_check_branch
      %63 = sbr.rel (%p61) target = $region29
    $region28: #{tpu_custom_call.1} parent=1 // pred_region
      %v64 = vld [vmem:[#allocation4] sm:$0xff]
      %v65 = vld [vmem:[#allocation7] sm:$0xff]
      %v66 = vld [vmem:[#allocation7 + $0x8] sm:$0xff]
      %67 = vrot.lane.b32.xlu0 %v64, 119
      %v68 = vpop.permute.xlu0 %67
      %70 = vset.pattern.permute.xlu0 0
      %71 = vperm.xlu0 %70, %v65
      %v72 = vpop.permute.xlu0 %71
      %v74 = vmul.f32 %v72, %v68
      %75 = vst [vmem:[#allocation2] sm:$0xff] %v74
      %77 = vset.pattern.permute.xlu0 0
      %78 = vperm.xlu0 %77, %v66
      %v79 = vpop.permute.xlu0 %78
      %v81 = vmul.f32 %v79, %v68
      %82 = vst [vmem:[#allocation2 + $0x8] sm:$0xff] %v81
      %83 = vrot.lane.b32.xlu0 %v64, 118
      %v84 = vpop.permute.xlu0 %83
      %85 = vset.pattern.permute.xlu0 1
      %86 = vperm.xlu0 %85, %v65
      %v87 = vpop.permute.xlu0 %86
      %v89 = vmul.f32 %v87, %v84
      %v90 = vld [vmem:[#allocation2] sm:$0xff]
      %v91 = vadd.f32 %v90, %v89
      %92 = vst [vmem:[#allocation2] sm:$0xff] %v91
      %93 = vset.pattern.permute.xlu0 1
      %94 = vperm.xlu0 %93, %v66
      %v95 = vpop.permute.xlu0 %94
      %v97 = vmul.f32 %v95, %v84
      %v98 = vld [vmem:[#allocation2 + $0x8] sm:$0xff]
      %v99 = vadd.f32 %v98, %v97
      %100 = vst [vmem:[#allocation2 + $0x8] sm:$0xff] %v99
      %101 = vrot.lane.b32.xlu0 %v64, 117
      %v102 = vpop.permute.xlu0 %101
      %103 = vset.pattern.permute.xlu0 2
      %104 = vperm.xlu0 %103, %v65
      %v105 = vpop.permute.xlu0 %104
      %v107 = vmul.f32 %v105, %v102
      %v108 = vld [vmem:[#allocation2] sm:$0xff]
      %v109 = vadd.f32 %v108, %v107
      %110 = vst [vmem:[#allocation2] sm:$0xff] %v109
      %111 = vset.pattern.permute.xlu0 2
      %112 = vperm.xlu0 %111, %v66
      %v113 = vpop.permute.xlu0 %112
      %v115 = vmul.f32 %v113, %v102
      %v116 = vld [vmem:[#allocation2 + $0x8] sm:$0xff]
      %v117 = vadd.f32 %v116, %v115
      %118 = vst [vmem:[#allocation2 + $0x8] sm:$0xff] %v117
      %119 = vrot.lane.b32.xlu0 %v64, 116
      %v120 = vpop.permute.xlu0 %119
      %121 = vset.pattern.permute.xlu0 3
      %122 = vperm.xlu0 %121, %v65
      %v123 = vpop.permute.xlu0 %122
      %v125 = vmul.f32 %v123, %v120
      %v126 = vld [vmem:[#allocation2] sm:$0xff]
      %v127 = vadd.f32 %v126, %v125
      %128 = vst [vmem:[#allocation2] sm:$0xff] %v127
      %129 = vset.pattern.permute.xlu0 3
      %130 = vperm.xlu0 %129, %v66
      %v131 = vpop.permute.xlu0 %130
      %v133 = vmul.f32 %v131, %v120
      %v134 = vld [vmem:[#allocation2 + $0x8] sm:$0xff]
      %v135 = vadd.f32 %v134, %v133
      %136 = vst [vmem:[#allocation2 + $0x8] sm:$0xff] %v135
      %137 = vrot.lane.b32.xlu0 %v64, 115
      %v138 = vpop.permute.xlu0 %137
      %139 = vset.pattern.permute.xlu0 4
      %140 = vperm.xlu0 %139, %v65
      %v141 = vpop.permute.xlu0 %140
      %v143 = vmul.f32 %v141, %v138
      %v144 = vld [vmem:[#allocation2] sm:$0xff]
      %v145 = vadd.f32 %v144, %v143
      %146 = vst [vmem:[#allocation2] sm:$0xff] %v145
      %147 = vset.pattern.permute.xlu0 4
      %148 = vperm.xlu0 %147, %v66
      %v149 = vpop.permute.xlu0 %148
      %v151 = vmul.f32 %v149, %v138
      %v152 = vld [vmem:[#allocation2 + $0x8] sm:$0xff]
      %v153 = vadd.f32 %v152, %v151
      %154 = vst [vmem:[#allocation2 + $0x8] sm:$0xff] %v153
      %155 = vrot.lane.b32.xlu0 %v64, 114
      %v156 = vpop.permute.xlu0 %155
      %157 = vset.pattern.permute.xlu0 5
      %158 = vperm.xlu0 %157, %v65
      %v159 = vpop.permute.xlu0 %158
      %v161 = vmul.f32 %v159, %v156
      %v162 = vld [vmem:[#allocation2] sm:$0xff]
      %v163 = vadd.f32 %v162, %v161
      %164 = vst [vmem:[#allocation2] sm:$0xff] %v163
      %165 = vset.pattern.permute.xlu0 5
      %166 = vperm.xlu0 %165, %v66
      %v167 = vpop.permute.xlu0 %166
      %v169 = vmul.f32 %v167, %v156
      %v170 = vld [vmem:[#allocation2 + $0x8] sm:$0xff]
      %v171 = vadd.f32 %v170, %v169
      %172 = vst [vmem:[#allocation2 + $0x8] sm:$0xff] %v171
      %173 = vrot.lane.b32.xlu0 %v64, 113
      %v174 = vpop.permute.xlu0 %173
      %175 = vset.pattern.permute.xlu0 6
      %176 = vperm.xlu0 %175, %v65
      %v177 = vpop.permute.xlu0 %176
      %v179 = vmul.f32 %v177, %v174
      %v180 = vld [vmem:[#allocation2] sm:$0xff]
      %v181 = vadd.f32 %v180, %v179
      %182 = vst [vmem:[#allocation2] sm:$0xff] %v181
      %183 = vset.pattern.permute.xlu0 6
      %184 = vperm.xlu0 %183, %v66
      %v185 = vpop.permute.xlu0 %184
      %v187 = vmul.f32 %v185, %v174
      %v188 = vld [vmem:[#allocation2 + $0x8] sm:$0xff]
      %v189 = vadd.f32 %v188, %v187
      %190 = vst [vmem:[#allocation2 + $0x8] sm:$0xff] %v189
      %191 = vrot.lane.b32.xlu0 %v64, 112
      %v192 = vpop.permute.xlu0 %191
      %193 = vset.pattern.permute.xlu0 7
      %194 = vperm.xlu0 %193, %v65
      %v195 = vpop.permute.xlu0 %194
      %v197 = vmul.f32 %v195, %v192
      %v198 = vld [vmem:[#allocation2] sm:$0xff]
      %v199 = vadd.f32 %v198, %v197
      %200 = vst [vmem:[#allocation2] sm:$0xff] %v199
      %201 = vset.pattern.permute.xlu0 7
      %202 = vperm.xlu0 %201, %v66
      %v203 = vpop.permute.xlu0 %202
      %v205 = vmul.f32 %v203, %v192
      %v206 = vld [vmem:[#allocation2 + $0x8] sm:$0xff]
      %v207 = vadd.f32 %v206, %v205
      %208 = vst [vmem:[#allocation2 + $0x8] sm:$0xff] %v207
      %209 = vrot.lane.b32.xlu0 %v64, 111
      %v210 = vpop.permute.xlu0 %209
      %211 = vset.pattern.permute.xlu0 8
      %212 = vperm.xlu0 %211, %v65
      %v213 = vpop.permute.xlu0 %212
      %v215 = vmul.f32 %v213, %v210
      %v216 = vld [vmem:[#allocation2] sm:$0xff]
      %v217 = vadd.f32 %v216, %v215
      %218 = vst [vmem:[#allocation2] sm:$0xff] %v217
      %219 = vset.pattern.permute.xlu0 8
      %220 = vperm.xlu0 %219, %v66
      %v221 = vpop.permute.xlu0 %220
      %v223 = vmul.f32 %v221, %v210
      %v224 = vld [vmem:[#allocation2 + $0x8] sm:$0xff]
      %v225 = vadd.f32 %v224, %v223
      %226 = vst [vmem:[#allocation2 + $0x8] sm:$0xff] %v225
      %v227 = vld [vmem:[#allocation2] sm:$0xff]
      %v228 = vld [vmem:[#allocation2 + $0x8] sm:$0xff]
      %v229 = vpack.c.bf16 %v227, %v227
      %v230 = vpack.c.bf16 %v228, %v228
      %231 = vst [vmem:[#allocation3] sm:$0xf] %v229
      %232 = vst [vmem:[#allocation3 + $0x4] sm:$0xf] %v230
    $region29: #{tpu_custom_call.1} parent=1 // pred_fallthru
      _
    %v233 = vld [vmem:[#allocation3] sm:$0xf]
    %v234 = vld [vmem:[#allocation3 + $0x4] sm:$0xf]
    %v235 = vld [vmem:[#allocation9] sm:$0xf]
    %v236 = vld [vmem:[#allocation9 + $0x4] sm:$0xf]
    %v237 = vld [vmem:[#allocation9 + $0x8] sm:$0xf]
    %v238 = vld [vmem:[#allocation9 + $0xc] sm:$0xf]
    %v239 = vld [vmem:[#allocation9 + $0x10] sm:$0xf]
    %v240 = vld [vmem:[#allocation9 + $0x14] sm:$0xf]
    %v241 = vld [vmem:[#allocation9 + $0x18] sm:$0xf]
    %v242 = vld [vmem:[#allocation9 + $0x1c] sm:$0xf]
    %v243 = vld [vmem:[#allocation9 + $0x20] sm:$0xf]
    %v244 = vld [vmem:[#allocation9 + $0x24] sm:$0xf]
    %v245 = vld [vmem:[#allocation9 + $0x28] sm:$0xf]
    %v246 = vld [vmem:[#allocation9 + $0x2c] sm:$0xf]
    %v247 = vld [vmem:[#allocation9 + $0x30] sm:$0xf]
    %v248 = vld [vmem:[#allocation9 + $0x34] sm:$0xf]
    %v249 = vld [vmem:[#allocation9 + $0x38] sm:$0xf]
    %v250 = vld [vmem:[#allocation9 + $0x3c] sm:$0xf]
    %v253 = vunpack.c.l.b16 %v233
    %v254 = vunpack.c.l.b16 %v234
    %v255 = vpack.c.b16 %v254, %v253
    %v273 = vunpack.c.l.b16 %v235
    %v274 = vunpack.c.l.b16 %v236
    %v275 = vunpack.c.l.b16 %v237
    %v276 = vunpack.c.l.b16 %v238
    %v277 = vunpack.c.l.b16 %v239
    %v278 = vunpack.c.l.b16 %v240
    %v279 = vunpack.c.l.b16 %v241
    %v280 = vunpack.c.l.b16 %v242
    %v281 = vunpack.c.l.b16 %v243
    %v282 = vunpack.c.l.b16 %v244
    %v283 = vunpack.c.l.b16 %v245
    %v284 = vunpack.c.l.b16 %v246
    %v285 = vunpack.c.l.b16 %v247
    %v286 = vunpack.c.l.b16 %v248
    %v287 = vunpack.c.l.b16 %v249
    %v288 = vunpack.c.l.b16 %v250
    %v289 = vpack.c.b16 %v274, %v273
    %v290 = vpack.c.b16 %v276, %v275
    %v291 = vpack.c.b16 %v278, %v277
    %v292 = vpack.c.b16 %v280, %v279
    %v293 = vpack.c.b16 %v282, %v281
    %v294 = vpack.c.b16 %v284, %v283
    %v295 = vpack.c.b16 %v286, %v285
    %v296 = vpack.c.b16 %v288, %v287
    %305 = vmatpush.bf16.msra.mxu0 %v296
    %306 = vmatpush.bf16.msra.mxu0 %v295
    %307 = vmatpush.bf16.msra.mxu0 %v294
    %308 = vmatpush.bf16.msra.mxu0 %v293
    %309 = vmatpush.bf16.msra.mxu0 %v292
    %310 = vmatpush.bf16.msra.mxu0 %v291
    %311 = vmatpush.bf16.msra.mxu0 %v290
    %312 = vmatpush.bf16.msra.mxu0 %v289
    %313 = vmatmul.bf16.gmra.mxu0 %v255
    %v314 = vpop.f32.mrf.mxu0
    %v315 = vadd.f32 0.0, %v314
    %v316 = vpop.f32.mrf.mxu0
    %v317 = vadd.f32 0.0, %v316
    %318 = vdwg.mxu0
    %s319 = smul.u32 0, 128
    %s320 = sshra.s32 %s319, 7
    %s321 = sand.u32 %s319, 127
    %s322 = scalar_lea.vmem [#allocation2], %s320
    %v323 = vld [vmem:[%s322] sm:$0xff]
    %v324 = vld [vmem:[%s322 + $0x8] sm:$0xff]
    %v325 = vmul.f32 %v323, %v323
    %v326 = vmul.f32 %v324, %v324
    %v327 = vmul.f32 %v315, %v315
    %v328 = vmul.f32 %v317, %v317
    %v329 = vadd.f32 %v325, %v327
    %v330 = vadd.f32 %v326, %v328
    %v331 = vrsqrt.pop %v329
    %v332 = vmul.f32 %v331, %v329
    %v333 = vmul.f32 %v332, %v331
    %v334 = vmul.f32 0.5, %v333
    %v335 = vsub.f32 1.5, %v334
    %v336 = vmul.f32 %v331, %v335
    %v337 = vmul.f32 %v329, %v336
    %vm338 = vcmp.eq.f32.partialorder %v329, inf
    %v339 = vsel %vm338, %v329, %v337
    %vm340 = vcmp.eq.f32.partialorder %v329, 0.0
    %v341 = vand.u32 %v329, 2147483648
    %v342 = vsel %vm340, %v341, %v339
    %v343 = vrsqrt.pop %v330
    %v344 = vmul.f32 %v343, %v330
    %v345 = vmul.f32 %v344, %v343
    %v346 = vmul.f32 0.5, %v345
    %v347 = vsub.f32 1.5, %v346
    %v348 = vmul.f32 %v343, %v347
    %v349 = vmul.f32 %v330, %v348
    %vm350 = vcmp.eq.f32.partialorder %v330, inf
    %v351 = vsel %vm350, %v330, %v349
    %vm352 = vcmp.eq.f32.partialorder %v330, 0.0
    %v353 = vand.u32 %v330, 2147483648
    %v354 = vsel %vm352, %v353, %v351
    %355 = vst [vmem:[#allocation10] sm:$0xff] %v342
    %356 = vst [vmem:[#allocation10 + $0x8] sm:$0xff] %v354
    // Predicated region
    $region30: #{tpu_custom_call.1} parent=1 // pred_check
      _
    $region31: #{tpu_custom_call.1} parent=1 // pred_check_branch
      %358 = sbr.rel (0) target = $region33
    $region32: #{tpu_custom_call.1} parent=1 // pred_region
      %360 = vsyncadd [#allocation6], 0
      %s361 = sshll.u32 [#allocation10], 4
      %s362 = int_to_ptr.vmem [resolvable:$true] %s361
      %s363 = sshll.u32 %s3, 4
      %s364 = int_to_ptr.hbm [resolvable:$true] %s363
      %369 = dma.vmem_to_hbm [thread:$0]  %s362, 256, %s364, [#allocation6], 128, 128, 8
    $region33: #{tpu_custom_call.1} parent=1 // pred_fallthru
      _
    // Predicated region
    $region34: #{tpu_custom_call.1} parent=1 // pred_check
      _
    $region35: #{tpu_custom_call.1} parent=1 // pred_check_branch
      %371 = sbr.rel (0) target = $region37
    $region36: #{tpu_custom_call.1} parent=1 // pred_region
      %373 = dma.done [#allocation6], 256
    $region37: #{tpu_custom_call.1} parent=1 // pred_fallthru
      _
    %374 = vsyncpa [#allocation5], 1
    %375 = vsyncpa [#allocation8], 1
    %376 = vsyncpa [#allocation6], 1

// kernel: tpu_custom_call.1
$region0: #{tpu_custom_call.1}
  #allocation0 [shape = 'u32[]', space=smem, size = 0x4, offset = 0x4, fixed_abs, tag = 'smem constant byte address 0x4 - core index']
  #allocation1 [shape = 'u32[72,128]{1,0:T(1,128)}', space=vmem, size = 0x9000, scoped, tag = 'internal scratch']
  #allocation2 [shape = 'f32[16,128]{1,0:T(8,128)}', space=vmem, size = 0x2000, scoped, tag = 'scratch operand']
  #allocation3 [shape = 'bf16[16,128]{1,0:T(8,128)(2,1)}', space=vmem, size = 0x1000, scoped, tag = 'scratch operand']
  %s0 = inlined_call_operand.hbm [shape: f32[8,128], index: 0, kind: input, shape index: {}]
  %s1 = inlined_call_operand.hbm [shape: f32[16,9], index: 1, kind: input, shape index: {}]
  %s2 = inlined_call_operand.hbm [shape: bf16[128,128], index: 2, kind: input, shape index: {}]
  %s3 = inlined_call_operand.hbm [shape: f32[16,128], index: 3, kind: output, shape index: {}]
  %s4 = sld [smem:[#allocation0]]
  $region38: #{tpu_custom_call.1} parent=0
    _
  %s6 = ssub.s32 1, %s4
  %s7 = scalar_select 0, %s6, %s4
  $region1: #{tpu_custom_call.1} parent=0
    #allocation4 [shape = 'u8[4096]{0}', space=vmem, size = 0x1000, scoped, tag = 'input window, operand 0, single buffered']
    #allocation5 [shape = 's32[1]{0}', space=sflag, size = 0x4, scoped, tag = 'scoped memory for tpu_custom_call.1']
    #allocation6 [shape = 's32[1]{0}', space=sflag, size = 0x4, scoped, tag = 'scoped memory for tpu_custom_call.1']
    #allocation7 [shape = 'u8[8192]{0}', space=vmem, size = 0x2000, scoped, tag = 'input window, operand 1, single buffered']
    #allocation8 [shape = 's32[1]{0}', space=sflag, size = 0x4, scoped, tag = 'scoped memory for tpu_custom_call.1']
    #allocation9 [shape = 'u8[32768]{0}', space=vmem, size = 0x8000, scoped, tag = 'input window, operand 2, single buffered']
    #allocation10 [shape = 'u8[8192]{0}', space=vmem, size = 0x2000, scoped, tag = 'output window, operand 0, single buffered']
    %8 = vsyncpa [#allocation5], 0
    %9 = vsyncpa [#allocation8], 0
    %10 = vsyncpa [#allocation6], 0
    // Predicated region
    $region2: #{tpu_custom_call.1} parent=1 // pred_check
      _
    $region3: #{tpu_custom_call.1} parent=1 // pred_check_branch
      %12 = sbr.rel (0) target = $region5
    $region4: #{tpu_custom_call.1} parent=1 // pred_region
      %14 = vsyncadd [#allocation5], 0
      %s16 = sshll.u32 %s0, 4
      %s17 = int_to_ptr.hbm [resolvable:$true] %s16
      %s18 = sshll.u32 [#allocation4], 4
      %s19 = int_to_ptr.vmem [resolvable:$true] %s18
      %21 = dma.hbm_to_vmem [thread:$0]  %s17, 128, %s19, [#allocation5]
    $region5: #{tpu_custom_call.1} parent=1 // pred_fallthru
      _
    // Predicated region
    $region6: #{tpu_custom_call.1} parent=1 // pred_check
      _
    $region7: #{tpu_custom_call.1} parent=1 // pred_check_branch
      %23 = sbr.rel (0) target = $region9
    $region8: #{tpu_custom_call.1} parent=1 // pred_region
      %25 = vsyncadd [#allocation8], 0
      %s26 = sshll.u32 %s1, 4
      %s27 = int_to_ptr.hbm [resolvable:$true] %s26
      %s28 = sshll.u32 [#allocation7], 4
      %s29 = int_to_ptr.vmem [resolvable:$true] %s28
      %34 = dma.hbm_to_vmem [thread:$0]  %s27, 256, %s29, [#allocation8], 128, 128, 8
    $region9: #{tpu_custom_call.1} parent=1 // pred_fallthru
      _
    // Predicated region
    $region10: #{tpu_custom_call.1} parent=1 // pred_check
      _
    $region11: #{tpu_custom_call.1} parent=1 // pred_check_branch
      %36 = sbr.rel (0) target = $region13
    $region12: #{tpu_custom_call.1} parent=1 // pred_region
      %38 = vsyncadd [#allocation8], 0
      %s39 = sshll.u32 %s2, 4
      %s40 = int_to_ptr.hbm [resolvable:$true] %s39
      %s41 = sshll.u32 [#allocation9], 4
      %s42 = int_to_ptr.vmem [resolvable:$true] %s41
      %47 = dma.hbm_to_vmem [thread:$0]  %s40, 1024, %s42, [#allocation8], 64, 64, 4
    $region13: #{tpu_custom_call.1} parent=1 // pred_fallthru
      _
    // Predicated region
    $region14: #{tpu_custom_call.1} parent=1 // pred_check
      _
    $region15: #{tpu_custom_call.1} parent=1 // pred_check_branch
      %49 = sbr.rel (0) target = $region17
    $region16: #{tpu_custom_call.1} parent=1 // pred_region
      %51 = dma.done [#allocation5], 128
    $region17: #{tpu_custom_call.1} parent=1 // pred_fallthru
      _
    // Predicated region
    $region18: #{tpu_custom_call.1} parent=1 // pred_check
      _
    $region19: #{tpu_custom_call.1} parent=1 // pred_check_branch
      %53 = sbr.rel (0) target = $region21
    $region20: #{tpu_custom_call.1} parent=1 // pred_region
      %55 = dma.done [#allocation8], 256
    $region21: #{tpu_custom_call.1} parent=1 // pred_fallthru
      _
    // Predicated region
    $region22: #{tpu_custom_call.1} parent=1 // pred_check
      _
    $region23: #{tpu_custom_call.1} parent=1 // pred_check_branch
      %57 = sbr.rel (0) target = $region25
    $region24: #{tpu_custom_call.1} parent=1 // pred_region
      %59 = dma.done [#allocation8], 1024
    $region25: #{tpu_custom_call.1} parent=1 // pred_fallthru
      _
    %p60 = scmp.eq.s32.totalorder 0, 0
    // Predicated region
    $region26: #{tpu_custom_call.1} parent=1 // pred_check
      %p61 = pneg %p60
    $region27: #{tpu_custom_call.1} parent=1 // pred_check_branch
      %63 = sbr.rel (%p61) target = $region29
    $region28: #{tpu_custom_call.1} parent=1 // pred_region
      %v64 = vld [vmem:[#allocation4] sm:$0xff]
      %v65 = vld [vmem:[#allocation7] sm:$0xff]
      %v66 = vld [vmem:[#allocation7 + $0x8] sm:$0xff]
      %67 = vrot.lane.b32.xlu0 %v64, 119
      %v68 = vpop.permute.xlu0 %67
      %70 = vset.pattern.permute.xlu0 0
      %71 = vperm.xlu0 %70, %v65
      %v72 = vpop.permute.xlu0 %71
      %v74 = vmul.f32 %v72, %v68
      %75 = vst [vmem:[#allocation2] sm:$0xff] %v74
      %77 = vset.pattern.permute.xlu0 0
      %78 = vperm.xlu0 %77, %v66
      %v79 = vpop.permute.xlu0 %78
      %v81 = vmul.f32 %v79, %v68
      %82 = vst [vmem:[#allocation2 + $0x8] sm:$0xff] %v81
      %83 = vrot.lane.b32.xlu0 %v64, 118
      %v84 = vpop.permute.xlu0 %83
      %85 = vset.pattern.permute.xlu0 1
      %86 = vperm.xlu0 %85, %v65
      %v87 = vpop.permute.xlu0 %86
      %v89 = vmul.f32 %v87, %v84
      %v90 = vld [vmem:[#allocation2] sm:$0xff]
      %v91 = vadd.f32 %v90, %v89
      %92 = vst [vmem:[#allocation2] sm:$0xff] %v91
      %93 = vset.pattern.permute.xlu0 1
      %94 = vperm.xlu0 %93, %v66
      %v95 = vpop.permute.xlu0 %94
      %v97 = vmul.f32 %v95, %v84
      %v98 = vld [vmem:[#allocation2 + $0x8] sm:$0xff]
      %v99 = vadd.f32 %v98, %v97
      %100 = vst [vmem:[#allocation2 + $0x8] sm:$0xff] %v99
      %101 = vrot.lane.b32.xlu0 %v64, 117
      %v102 = vpop.permute.xlu0 %101
      %103 = vset.pattern.permute.xlu0 2
      %104 = vperm.xlu0 %103, %v65
      %v105 = vpop.permute.xlu0 %104
      %v107 = vmul.f32 %v105, %v102
      %v108 = vld [vmem:[#allocation2] sm:$0xff]
      %v109 = vadd.f32 %v108, %v107
      %110 = vst [vmem:[#allocation2] sm:$0xff] %v109
      %111 = vset.pattern.permute.xlu0 2
      %112 = vperm.xlu0 %111, %v66
      %v113 = vpop.permute.xlu0 %112
      %v115 = vmul.f32 %v113, %v102
      %v116 = vld [vmem:[#allocation2 + $0x8] sm:$0xff]
      %v117 = vadd.f32 %v116, %v115
      %118 = vst [vmem:[#allocation2 + $0x8] sm:$0xff] %v117
      %119 = vrot.lane.b32.xlu0 %v64, 116
      %v120 = vpop.permute.xlu0 %119
      %121 = vset.pattern.permute.xlu0 3
      %122 = vperm.xlu0 %121, %v65
      %v123 = vpop.permute.xlu0 %122
      %v125 = vmul.f32 %v123, %v120
      %v126 = vld [vmem:[#allocation2] sm:$0xff]
      %v127 = vadd.f32 %v126, %v125
      %128 = vst [vmem:[#allocation2] sm:$0xff] %v127
      %129 = vset.pattern.permute.xlu0 3
      %130 = vperm.xlu0 %129, %v66
      %v131 = vpop.permute.xlu0 %130
      %v133 = vmul.f32 %v131, %v120
      %v134 = vld [vmem:[#allocation2 + $0x8] sm:$0xff]
      %v135 = vadd.f32 %v134, %v133
      %136 = vst [vmem:[#allocation2 + $0x8] sm:$0xff] %v135
      %137 = vrot.lane.b32.xlu0 %v64, 115
      %v138 = vpop.permute.xlu0 %137
      %139 = vset.pattern.permute.xlu0 4
      %140 = vperm.xlu0 %139, %v65
      %v141 = vpop.permute.xlu0 %140
      %v143 = vmul.f32 %v141, %v138
      %v144 = vld [vmem:[#allocation2] sm:$0xff]
      %v145 = vadd.f32 %v144, %v143
      %146 = vst [vmem:[#allocation2] sm:$0xff] %v145
      %147 = vset.pattern.permute.xlu0 4
      %148 = vperm.xlu0 %147, %v66
      %v149 = vpop.permute.xlu0 %148
      %v151 = vmul.f32 %v149, %v138
      %v152 = vld [vmem:[#allocation2 + $0x8] sm:$0xff]
      %v153 = vadd.f32 %v152, %v151
      %154 = vst [vmem:[#allocation2 + $0x8] sm:$0xff] %v153
      %155 = vrot.lane.b32.xlu0 %v64, 114
      %v156 = vpop.permute.xlu0 %155
      %157 = vset.pattern.permute.xlu0 5
      %158 = vperm.xlu0 %157, %v65
      %v159 = vpop.permute.xlu0 %158
      %v161 = vmul.f32 %v159, %v156
      %v162 = vld [vmem:[#allocation2] sm:$0xff]
      %v163 = vadd.f32 %v162, %v161
      %164 = vst [vmem:[#allocation2] sm:$0xff] %v163
      %165 = vset.pattern.permute.xlu0 5
      %166 = vperm.xlu0 %165, %v66
      %v167 = vpop.permute.xlu0 %166
      %v169 = vmul.f32 %v167, %v156
      %v170 = vld [vmem:[#allocation2 + $0x8] sm:$0xff]
      %v171 = vadd.f32 %v170, %v169
      %172 = vst [vmem:[#allocation2 + $0x8] sm:$0xff] %v171
      %173 = vrot.lane.b32.xlu0 %v64, 113
      %v174 = vpop.permute.xlu0 %173
      %175 = vset.pattern.permute.xlu0 6
      %176 = vperm.xlu0 %175, %v65
      %v177 = vpop.permute.xlu0 %176
      %v179 = vmul.f32 %v177, %v174
      %v180 = vld [vmem:[#allocation2] sm:$0xff]
      %v181 = vadd.f32 %v180, %v179
      %182 = vst [vmem:[#allocation2] sm:$0xff] %v181
      %183 = vset.pattern.permute.xlu0 6
      %184 = vperm.xlu0 %183, %v66
      %v185 = vpop.permute.xlu0 %184
      %v187 = vmul.f32 %v185, %v174
      %v188 = vld [vmem:[#allocation2 + $0x8] sm:$0xff]
      %v189 = vadd.f32 %v188, %v187
      %190 = vst [vmem:[#allocation2 + $0x8] sm:$0xff] %v189
      %191 = vrot.lane.b32.xlu0 %v64, 112
      %v192 = vpop.permute.xlu0 %191
      %193 = vset.pattern.permute.xlu0 7
      %194 = vperm.xlu0 %193, %v65
      %v195 = vpop.permute.xlu0 %194
      %v197 = vmul.f32 %v195, %v192
      %v198 = vld [vmem:[#allocation2] sm:$0xff]
      %v199 = vadd.f32 %v198, %v197
      %200 = vst [vmem:[#allocation2] sm:$0xff] %v199
      %201 = vset.pattern.permute.xlu0 7
      %202 = vperm.xlu0 %201, %v66
      %v203 = vpop.permute.xlu0 %202
      %v205 = vmul.f32 %v203, %v192
      %v206 = vld [vmem:[#allocation2 + $0x8] sm:$0xff]
      %v207 = vadd.f32 %v206, %v205
      %208 = vst [vmem:[#allocation2 + $0x8] sm:$0xff] %v207
      %209 = vrot.lane.b32.xlu0 %v64, 111
      %v210 = vpop.permute.xlu0 %209
      %211 = vset.pattern.permute.xlu0 8
      %212 = vperm.xlu0 %211, %v65
      %v213 = vpop.permute.xlu0 %212
      %v215 = vmul.f32 %v213, %v210
      %v216 = vld [vmem:[#allocation2] sm:$0xff]
      %v217 = vadd.f32 %v216, %v215
      %218 = vst [vmem:[#allocation2] sm:$0xff] %v217
      %219 = vset.pattern.permute.xlu0 8
      %220 = vperm.xlu0 %219, %v66
      %v221 = vpop.permute.xlu0 %220
      %v223 = vmul.f32 %v221, %v210
      %v224 = vld [vmem:[#allocation2 + $0x8] sm:$0xff]
      %v225 = vadd.f32 %v224, %v223
      %226 = vst [vmem:[#allocation2 + $0x8] sm:$0xff] %v225
      %v227 = vld [vmem:[#allocation2] sm:$0xff]
      %v228 = vld [vmem:[#allocation2 + $0x8] sm:$0xff]
      %v229 = vpack.c.bf16 %v227, %v227
      %v230 = vpack.c.bf16 %v228, %v228
      %231 = vst [vmem:[#allocation3] sm:$0xf] %v229
      %232 = vst [vmem:[#allocation3 + $0x4] sm:$0xf] %v230
    $region29: #{tpu_custom_call.1} parent=1 // pred_fallthru
      _
    %v233 = vld [vmem:[#allocation3] sm:$0xf]
    %v234 = vld [vmem:[#allocation3 + $0x4] sm:$0xf]
    %v235 = vld [vmem:[#allocation9] sm:$0xf]
    %v236 = vld [vmem:[#allocation9 + $0x4] sm:$0xf]
    %v237 = vld [vmem:[#allocation9 + $0x8] sm:$0xf]
    %v238 = vld [vmem:[#allocation9 + $0xc] sm:$0xf]
    %v239 = vld [vmem:[#allocation9 + $0x10] sm:$0xf]
    %v240 = vld [vmem:[#allocation9 + $0x14] sm:$0xf]
    %v241 = vld [vmem:[#allocation9 + $0x18] sm:$0xf]
    %v242 = vld [vmem:[#allocation9 + $0x1c] sm:$0xf]
    %v243 = vld [vmem:[#allocation9 + $0x20] sm:$0xf]
    %v244 = vld [vmem:[#allocation9 + $0x24] sm:$0xf]
    %v245 = vld [vmem:[#allocation9 + $0x28] sm:$0xf]
    %v246 = vld [vmem:[#allocation9 + $0x2c] sm:$0xf]
    %v247 = vld [vmem:[#allocation9 + $0x30] sm:$0xf]
    %v248 = vld [vmem:[#allocation9 + $0x34] sm:$0xf]
    %v249 = vld [vmem:[#allocation9 + $0x38] sm:$0xf]
    %v250 = vld [vmem:[#allocation9 + $0x3c] sm:$0xf]
    %v253 = vunpack.c.l.b16 %v233
    %v254 = vunpack.c.l.b16 %v234
    %v255 = vpack.c.b16 %v254, %v253
    %v273 = vunpack.c.l.b16 %v235
    %v274 = vunpack.c.l.b16 %v236
    %v275 = vunpack.c.l.b16 %v237
    %v276 = vunpack.c.l.b16 %v238
    %v277 = vunpack.c.l.b16 %v239
    %v278 = vunpack.c.l.b16 %v240
    %v279 = vunpack.c.l.b16 %v241
    %v280 = vunpack.c.l.b16 %v242
    %v281 = vunpack.c.l.b16 %v243
    %v282 = vunpack.c.l.b16 %v244
    %v283 = vunpack.c.l.b16 %v245
    %v284 = vunpack.c.l.b16 %v246
    %v285 = vunpack.c.l.b16 %v247
    %v286 = vunpack.c.l.b16 %v248
    %v287 = vunpack.c.l.b16 %v249
    %v288 = vunpack.c.l.b16 %v250
    %v289 = vpack.c.b16 %v274, %v273
    %v290 = vpack.c.b16 %v276, %v275
    %v291 = vpack.c.b16 %v278, %v277
    %v292 = vpack.c.b16 %v280, %v279
    %v293 = vpack.c.b16 %v282, %v281
    %v294 = vpack.c.b16 %v284, %v283
    %v295 = vpack.c.b16 %v286, %v285
    %v296 = vpack.c.b16 %v288, %v287
    %305 = vmatpush.bf16.msra.mxu0 %v296
    %306 = vmatpush.bf16.msra.mxu0 %v295
    %307 = vmatpush.bf16.msra.mxu0 %v294
    %308 = vmatpush.bf16.msra.mxu0 %v293
    %309 = vmatpush.bf16.msra.mxu0 %v292
    %310 = vmatpush.bf16.msra.mxu0 %v291
    %311 = vmatpush.bf16.msra.mxu0 %v290
    %312 = vmatpush.bf16.msra.mxu0 %v289
    %313 = vmatmul.bf16.gmra.mxu0 %v255
    %v314 = vpop.f32.mrf.mxu0
    %v315 = vadd.f32 0.0, %v314
    %v316 = vpop.f32.mrf.mxu0
    %v317 = vadd.f32 0.0, %v316
    %318 = vdwg.mxu0
    %s319 = smul.u32 0, 128
    %s320 = sshra.s32 %s319, 7
    %s321 = sand.u32 %s319, 127
    %s322 = scalar_lea.vmem [#allocation2], %s320
    %v323 = vld [vmem:[%s322] sm:$0xff]
    %v324 = vld [vmem:[%s322 + $0x8] sm:$0xff]
    %v325 = vmul.f32 %v323, %v323
    %v326 = vmul.f32 %v324, %v324
    %v327 = vmul.f32 %v315, %v315
    %v328 = vmul.f32 %v317, %v317
    %v329 = vadd.f32 %v325, %v327
    %v330 = vadd.f32 %v326, %v328
    %v331 = vrsqrt.pop %v329
    %v332 = vmul.f32 %v331, %v329
    %v333 = vmul.f32 %v332, %v331
    %v334 = vmul.f32 0.5, %v333
    %v335 = vsub.f32 1.5, %v334
    %v336 = vmul.f32 %v331, %v335
    %v337 = vmul.f32 %v329, %v336
    %vm338 = vcmp.eq.f32.partialorder %v329, inf
    %v339 = vsel %vm338, %v329, %v337
    %vm340 = vcmp.eq.f32.partialorder %v329, 0.0
    %v341 = vand.u32 %v329, 2147483648
    %v342 = vsel %vm340, %v341, %v339
    %v343 = vrsqrt.pop %v330
    %v344 = vmul.f32 %v343, %v330
    %v345 = vmul.f32 %v344, %v343
    %v346 = vmul.f32 0.5, %v345
    %v347 = vsub.f32 1.5, %v346
    %v348 = vmul.f32 %v343, %v347
    %v349 = vmul.f32 %v330, %v348
    %vm350 = vcmp.eq.f32.partialorder %v330, inf
    %v351 = vsel %vm350, %v330, %v349
    %vm352 = vcmp.eq.f32.partialorder %v330, 0.0
    %v353 = vand.u32 %v330, 2147483648
    %v354 = vsel %vm352, %v353, %v351
    %355 = vst [vmem:[#allocation10] sm:$0xff] %v342
    %356 = vst [vmem:[#allocation10 + $0x8] sm:$0xff] %v354
    // Predicated region
    $region30: #{tpu_custom_call.1} parent=1 // pred_check
      _
    $region31: #{tpu_custom_call.1} parent=1 // pred_check_branch
      %358 = sbr.rel (0) target = $region33
    $region32: #{tpu_custom_call.1} parent=1 // pred_region
      %360 = vsyncadd [#allocation6], 0
      %s361 = sshll.u32 [#allocation10], 4
      %s362 = int_to_ptr.vmem [resolvable:$true] %s361
      %s363 = sshll.u32 %s3, 4
      %s364 = int_to_ptr.hbm [resolvable:$true] %s363
      %369 = dma.vmem_to_hbm [thread:$0]  %s362, 256, %s364, [#allocation6], 128, 128, 8
    $region33: #{tpu_custom_call.1} parent=1 // pred_fallthru
      _
    // Predicated region
    $region34: #{tpu_custom_call.1} parent=1 // pred_check
      _
    $region35: #{tpu_custom_call.1} parent=1 // pred_check_branch
      %371 = sbr.rel (0) target = $region37
    $region36: #{tpu_custom_call.1} parent=1 // pred_region
      %373 = dma.done [#allocation6], 256
    $region37: #{tpu_custom_call.1} parent=1 // pred_fallthru
      _
    %374 = vsyncpa [#allocation5], 1
    %375 = vsyncpa [#allocation8], 1
    %376 = vsyncpa [#allocation6], 1

</llo_original>
